<compile_context>
chip_gen: v6e
topology: v6e:2x2x1
jax: 0.10.0
libtpu: 0.0.40
codegen_flags: <defaults>
</compile_context>

<pallas_src>
import functools

import jax
import jax.numpy as jnp
from jax import lax
from jax.experimental import pallas as pl
from jax.experimental.pallas import tpu as pltpu


# ----------------------------------------------------------------------------------
# JAX glue: bilinear resize, NCHW (PyTorch F.interpolate, mode='bilinear',
# align_corners=False)
# ----------------------------------------------------------------------------------
def bilinear_resize_nchw(x, out_h, out_w):
    B, C, H, W = x.shape

    def coords(out_s, in_s):
        s = (jnp.arange(out_s, dtype=jnp.float32) + 0.5) * (in_s / out_s) - 0.5
        s = jnp.maximum(s, 0.0)
        i0 = jnp.minimum(jnp.floor(s).astype(jnp.int32), in_s - 1)
        i1 = jnp.minimum(i0 + 1, in_s - 1)
        return i0, i1, s - i0.astype(jnp.float32)

    h0, h1, fh = coords(out_h, H)
    w0, w1, fw = coords(out_w, W)
    xh0, xh1 = x[:, :, h0, :], x[:, :, h1, :]          # (B, C, out_h, W)
    fw_ = fw[None, None, None, :]
    top = xh0[:, :, :, w0] * (1.0 - fw_) + xh0[:, :, :, w1] * fw_
    bot = xh1[:, :, :, w0] * (1.0 - fw_) + xh1[:, :, :, w1] * fw_
    fh_ = fh[None, None, :, None]
    return top * (1.0 - fh_) + bot * fh_


def _supports_bf16_eup():
    """bf16 exp path only on chips with a bf16 EUP (v6e / v7x); v5e stays f32."""
    try:
        kind = jax.devices()[0].device_kind.lower()
    except Exception:
        return False
    return ("v6" in kind) or ("v7" in kind) or ("7x" in kind)


def _vmem_limit_bytes(HW, Cl, Ch, Cm):
    score = 2 * HW * HW * 4                                     # scores + probs (f32)
    acts = (4 * Cm + 2 * Cl) * HW * 4                           # q/k/v/o/out/norms
    blocks = 2 * (Cl * HW * 4 + Ch * HW * 2 + Cl * HW * 4)      # double-buffered I/O
    need = score + acts + blocks + (2 << 20)
    return int(min(max(2 * need, 32 << 20), 64 << 20))


# ----------------------------------------------------------------------------------
# Pallas kernel: fully fused CrossAttentionBlock, one batch element per grid step.
# All activations are channels-first (C, HW) so the lane axis is HW (lane-dense).
# ----------------------------------------------------------------------------------
def _cross_attn_kernel(low_ref, high_ref, wq_ref, wkv_ref, wo_ref, pk_ref, out_ref,
                       *, cl, cm, cpg, n_groups, inv_n, eps, bf16_exp):
    f32 = jnp.float32
    bf16 = jnp.bfloat16

    low = low_ref[0]          # (Cl, HW) f32
    high = high_ref[0]        # (Ch, HW) bf16 (already narrowed in the wrapper)
    pk = pk_ref[...]          # (P, 8)  f32 packed scalar params (columns)

    bq = pk[:cm, 0:1]         # (Cm, 1)  -- scale already folded in
    bkv = pk[:2 * cm, 1:2]    # (2Cm, 1)
    bo = pk[:cl, 2:3]         # (Cl, 1)
    g_l, b_l = pk[:cl, 3:4], pk[:cl, 4:5]
    g_o, b_o = pk[:cl, 5:6], pk[:cl, 6:7]

    # Static group-membership mask (Cl, Cl), built in-kernel (no DMA, no int div).
    row = lax.broadcasted_iota(jnp.int32, (cl, cl), 0)
    col = lax.broadcasted_iota(jnp.int32, (cl, cl), 1)
    gmask = jnp.zeros((cl, cl), f32)
    for g in range(n_groups):
        lo, hi = g * cpg, (g + 1) * cpg
        same = (row >= lo) & (row < hi) & (col >= lo) & (col < hi)
        gmask = gmask + same.astype(f32)

    def group_norm(x, gamma, beta):
        # two-pass stats (no E[x^2]-mean^2 cancellation); x is (C, HW) f32
        gsum = jnp.dot(gmask, x, preferred_element_type=f32)            # (C, HW)
        mean = jnp.sum(gsum, axis=1, keepdims=True) * inv_n             # (C, 1)
        d = x - mean
        gsq = jnp.dot(gmask, d * d, preferred_element_type=f32)
        var = jnp.sum(gsq, axis=1, keepdims=True) * inv_n
        return d * lax.rsqrt(var + eps) * gamma + beta

    # GroupNorm(low)
    low_norm = group_norm(low, g_l, b_l)                                # (Cl, HW)

    # 1x1 projections, channels-first: bf16 MXU operands, f32 accumulation.
    # q has the softmax scale folded into wq/bq; k & v are one fused matmul.
    q = jnp.dot(wq_ref[...], low_norm.astype(bf16),
                preferred_element_type=f32) + bq                        # (Cm, HW)
    kv = jnp.dot(wkv_ref[...], high,
                 preferred_element_type=f32) + bkv                      # (2Cm, HW)
    k = kv[:cm]
    v = kv[cm:]

    # scores: s[qi, ki] = sum_c q[c, qi] k[c, ki]   (scale already in q)
    s_qk = lax.dot_general(q.astype(bf16), k.astype(bf16),
                           (((0,), (0,)), ((), ())),
                           preferred_element_type=f32)                  # (HW, HW)

    # softmax with deferred normalization (row sums divided out after p @ v)
    m = jnp.max(s_qk, axis=-1, keepdims=True)
    sm = s_qk - m
    if bf16_exp:
        p = jnp.exp(sm.astype(bf16))          # bf16 EUP (v6e / v7x)
    else:
        p = jnp.exp(sm)                       # f32 (v5e has no bf16 EUP)
    row_sum = jnp.sum(p.astype(f32), axis=-1, keepdims=True)            # (HW, 1)

    # o[qi, c] = sum_k p[qi, k] v[c, k]
    o = lax.dot_general(p.astype(bf16), v.astype(bf16),
                        (((1,), (1,)), ((), ())),
                        preferred_element_type=f32)                     # (HW, Cm)
    o = o * pl.reciprocal(row_sum, approx=True)   # documented approx (~1e-3 rel)

    # output 1x1 projection back to channels-first + residual + GroupNorm(out)
    out = lax.dot_general(wo_ref[...], o.astype(bf16),
                          (((1,), (1,)), ((), ())),
                          preferred_element_type=f32) + bo              # (Cl, HW)
    out = out + low
    out_ref[0] = group_norm(out, g_o, b_o)        # lane-dense store (HW lanes)


# ----------------------------------------------------------------------------------
# wrapper (NCHW in / NCHW out, matching the PyTorch module)
# ----------------------------------------------------------------------------------
def cross_attention_block(params, low, high, *, groups=8, eps=1e-5):
    """low: (B, Cl, H, W), high: (B, Ch, h, w) -> (B, Cl, H, W) f32."""
    B, Cl, H, W = low.shape
    HW = H * W
    Cm = params["q_w"].shape[0]
    scale = float(Cm) ** -0.5
    cpg = Cl // groups

    if high.shape[2:] != (H, W):
        high = bilinear_resize_nchw(high, H, W)
    Ch = high.shape[1]

    def conv_w(w):  # PyTorch (Cout, Cin, 1, 1) -> (Cout, Cin)
        return w.reshape(w.shape[0], w.shape[1])

    # fold softmax scale into the q projection; fuse k||v into one matmul
    wq = (conv_w(params["q_w"]) * scale).astype(jnp.bfloat16)           # (Cm, Cl)
    wkv = jnp.concatenate([conv_w(params["k_w"]), conv_w(params["v_w"])],
                          axis=0).astype(jnp.bfloat16)                  # (2Cm, Ch)
    wo = conv_w(params["o_w"]).astype(jnp.bfloat16)                     # (Cl, Cm)

    # pack all bias / affine vectors as columns of one small f32 array
    P = max(Cl, 2 * Cm)
    pk = jnp.zeros((P, 8), jnp.float32)
    pk = pk.at[:Cm, 0].set(params["q_b"] * scale)
    pk = pk.at[:2 * Cm, 1].set(jnp.concatenate([params["k_b"], params["v_b"]]))
    pk = pk.at[:Cl, 2].set(params["o_b"])
    pk = pk.at[:Cl, 3].set(params["nl_g"])
    pk = pk.at[:Cl, 4].set(params["nl_b"])
    pk = pk.at[:Cl, 5].set(params["no_g"])
    pk = pk.at[:Cl, 6].set(params["no_b"])

    low_r = low.reshape(B, Cl, HW).astype(jnp.float32)       # feeds GN + residual
    high_r = high.reshape(B, Ch, HW).astype(jnp.bfloat16)    # only consumed as bf16

    kernel = functools.partial(
        _cross_attn_kernel,
        cl=Cl, cm=Cm, cpg=cpg, n_groups=groups,
        inv_n=1.0 / (HW * cpg), eps=eps,
        bf16_exp=_supports_bf16_eup(),
    )

    out = pl.pallas_call(
        kernel,
        out_shape=jax.ShapeDtypeStruct((B, Cl, HW), jnp.float32),
        grid=(B,),
        in_specs=[
            pl.BlockSpec((1, Cl, HW), lambda b: (b, 0, 0)),   # low  (f32)
            pl.BlockSpec((1, Ch, HW), lambda b: (b, 0, 0)),   # high (bf16, resized)
            pl.BlockSpec((Cm, Cl), lambda b: (0, 0)),         # wq (scale folded, bf16)
            pl.BlockSpec((2 * Cm, Ch), lambda b: (0, 0)),     # wk||wv (bf16)
            pl.BlockSpec((Cl, Cm), lambda b: (0, 0)),         # wo (bf16)
            pl.BlockSpec((P, 8), lambda b: (0, 0)),           # packed biases/affines
        ],
        out_specs=pl.BlockSpec((1, Cl, HW), lambda b: (b, 0, 0)),
        compiler_params=pltpu.CompilerParams(
            dimension_semantics=("parallel",),
            vmem_limit_bytes=_vmem_limit_bytes(HW, Cl, Ch, Cm),
        ),
    )(low_r, high_r, wq, wkv, wo, pk)

    return out.reshape(B, Cl, H, W)


# ----------------------------------------------------------------------------------
# pure-JAX reference (f32, NCHW) for correctness checking
# ----------------------------------------------------------------------------------
def _group_norm_ref(x, gamma, beta, groups, eps=1e-5):
    B, C, H, W = x.shape
    xg = x.reshape(B, groups, C // groups, H * W)
    mean = jnp.mean(xg, axis=(2, 3), keepdims=True)
    var = jnp.mean((xg - mean) ** 2, axis=(2, 3), keepdims=True)
    y = ((xg - mean) / jnp.sqrt(var + eps)).reshape(B, C, H, W)
    return y * gamma.reshape(1, C, 1, 1) + beta.reshape(1, C, 1, 1)


def cross_attention_ref(params, low, high, *, groups=8):
    B, Cl, H, W = low.shape
    Cm = params["q_w"].shape[0]
    scale = float(Cm) ** -0.5

    def c1(x, w, b):
        co, ci = w.shape[:2]
        return jnp.einsum("bchw,oc->bohw", x, w.reshape(co, ci)) + b.reshape(1, -1, 1, 1)

    low_norm = _group_norm_ref(low, params["nl_g"], params["nl_b"], groups)
    if high.shape[2:] != (H, W):
        high = bilinear_resize_nchw(high, H, W)
    q = c1(low_norm, params["q_w"], params["q_b"]).reshape(B, Cm, H * W)
    k = c1(high, params["k_w"], params["k_b"]).reshape(B, Cm, H * W)
    v = c1(high, params["v_w"], params["v_b"]).reshape(B, Cm, H * W)
    attn = jnp.einsum("bcq,bck->bqk", q, k) * scale
    attn = jax.nn.softmax(attn, axis=-1)
    o = jnp.einsum("bqk,bck->bcq", attn, v).reshape(B, Cm, H, W)
    o = c1(o, params["o_w"], params["o_b"])
    out = o + low
    return _group_norm_ref(out, params["no_g"], params["no_b"], groups)


# ----------------------------------------------------------------------------------
# deterministic parameter init (shapes follow the module's __init__)
# ----------------------------------------------------------------------------------
def init_params(key, low_channels, high_channels, mid_channels):
    Cl, Ch, Cm = low_channels, high_channels, mid_channels
    ks = jax.random.split(key, 12)

    def rand(k, shape, s=0.05):
        return s * jax.random.normal(k, shape, jnp.float32)

    return dict(
        q_w=rand(ks[0], (Cm, Cl, 1, 1)), q_b=rand(ks[1], (Cm,)),
        k_w=rand(ks[2], (Cm, Ch, 1, 1)), k_b=rand(ks[3], (Cm,)),
        v_w=rand(ks[4], (Cm, Ch, 1, 1)), v_b=rand(ks[5], (Cm,)),
        o_w=rand(ks[6], (Cl, Cm, 1, 1)), o_b=rand(ks[7], (Cl,)),
        nl_g=1.0 + rand(ks[8], (Cl,)), nl_b=rand(ks[9], (Cl,)),
        no_g=1.0 + rand(ks[10], (Cl,)), no_b=rand(ks[11], (Cl,)),
    )


# ----------------------------------------------------------------------------------
if __name__ == "__main__":
    B = 2
    H = W = 16
    low_channels = 32       # must be divisible by 8 (GroupNorm groups)
    high_channels = 64
    mid_channels = low_channels // 2

    key = jax.random.PRNGKey(0)
    k_low, k_high, k_param = jax.random.split(key, 3)
    low = jax.random.normal(k_low, (B, low_channels, H, W), jnp.float32)
    high = jax.random.normal(k_high, (B, high_channels, H // 2, W // 2), jnp.float32)

    params = init_params(k_param, low_channels, high_channels, mid_channels)

    fwd = jax.jit(cross_attention_block)
    out = jax.block_until_ready(fwd(params, low, high))

    assert out.shape == (B, low_channels, H, W), out.shape
    assert bool(jnp.all(jnp.isfinite(out)))

    ref = cross_attention_ref(params, low, high)
    max_err = float(jnp.max(jnp.abs(out - ref)))
    rel_err = float(jnp.linalg.norm(out - ref) / (jnp.linalg.norm(ref) + 1e-12))
    assert max_err < 1e-1, f"max abs err vs reference: {max_err}"
    assert rel_err < 2e-2, f"relative err vs reference: {rel_err}"

    print("KERNEL_OK")
</pallas_src>

<mosaic_0001>
module attributes {stable_mosaic.version = 11 : i64} {
  func.func @_cross_attn_kernel(%arg0: i32, %arg1: memref<1x32x256xf32, #tpu.memory_space<vmem>>, %arg2: memref<1x64x256xbf16, #tpu.memory_space<vmem>>, %arg3: memref<16x32xbf16, #tpu.memory_space<vmem>>, %arg4: memref<32x64xbf16, #tpu.memory_space<vmem>>, %arg5: memref<32x16xbf16, #tpu.memory_space<vmem>>, %arg6: memref<32x8xf32, #tpu.memory_space<vmem>>, %arg7: memref<1x32x256xf32, #tpu.memory_space<vmem>>) attributes {dimension_semantics = [#tpu.dimension_semantics<parallel>], iteration_bounds = array<i64: 2>, scalar_prefetch = 0 : i64, scratch_operands = 0 : i64, tpu.core_type = #tpu.core_type<tc>, window_params = [{transform_indices = @transform_0, window_bounds = array<i64: 1, 32, 256>}, {transform_indices = @transform_1, window_bounds = array<i64: 1, 64, 256>}, {pipeline_mode = #tpu.pipeline_mode<synchronous>, transform_indices = @transform_2, window_bounds = array<i64: 16, 32>}, {pipeline_mode = #tpu.pipeline_mode<synchronous>, transform_indices = @transform_3, window_bounds = array<i64: 32, 64>}, {pipeline_mode = #tpu.pipeline_mode<synchronous>, transform_indices = @transform_4, window_bounds = array<i64: 32, 16>}, {pipeline_mode = #tpu.pipeline_mode<synchronous>, transform_indices = @transform_5, window_bounds = array<i64: 32, 8>}, {transform_indices = @transform_6, window_bounds = array<i64: 1, 32, 256>}]} {
    %c0 = arith.constant 0 : index
    %c0_0 = arith.constant 0 : index
    %c0_1 = arith.constant 0 : index
    %0 = vector.load %arg1[%c0, %c0_0, %c0_1] : memref<1x32x256xf32, #tpu.memory_space<vmem>>, vector<1x32x256xf32>
    %1 = vector.shape_cast %0 : vector<1x32x256xf32> to vector<32x256xf32>
    %c0_2 = arith.constant 0 : index
    %c0_3 = arith.constant 0 : index
    %c0_4 = arith.constant 0 : index
    %2 = vector.load %arg2[%c0_2, %c0_3, %c0_4] : memref<1x64x256xbf16, #tpu.memory_space<vmem>>, vector<1x64x256xbf16>
    %3 = vector.shape_cast %2 : vector<1x64x256xbf16> to vector<64x256xbf16>
    %c0_5 = arith.constant 0 : index
    %c0_6 = arith.constant 0 : index
    %4 = vector.load %arg6[%c0_5, %c0_6] : memref<32x8xf32, #tpu.memory_space<vmem>>, vector<32x8xf32>
    %5 = vector.extract_strided_slice %4 {offsets = [0, 0], sizes = [16, 1], strides = [1, 1]} : vector<32x8xf32> to vector<16x1xf32>
    %6 = vector.extract_strided_slice %4 {offsets = [0, 1], sizes = [32, 1], strides = [1, 1]} : vector<32x8xf32> to vector<32x1xf32>
    %7 = vector.extract_strided_slice %4 {offsets = [0, 2], sizes = [32, 1], strides = [1, 1]} : vector<32x8xf32> to vector<32x1xf32>
    %8 = vector.extract_strided_slice %4 {offsets = [0, 3], sizes = [32, 1], strides = [1, 1]} : vector<32x8xf32> to vector<32x1xf32>
    %9 = vector.extract_strided_slice %4 {offsets = [0, 4], sizes = [32, 1], strides = [1, 1]} : vector<32x8xf32> to vector<32x1xf32>
    %10 = vector.extract_strided_slice %4 {offsets = [0, 5], sizes = [32, 1], strides = [1, 1]} : vector<32x8xf32> to vector<32x1xf32>
    %11 = vector.extract_strided_slice %4 {offsets = [0, 6], sizes = [32, 1], strides = [1, 1]} : vector<32x8xf32> to vector<32x1xf32>
    %12 = tpu.iota {dimensions = array<i32: 0>} : vector<32x32xi32>
    %13 = tpu.iota {dimensions = array<i32: 1>} : vector<32x32xi32>
    %cst = arith.constant 0.000000e+00 : f32
    %14 = vector.broadcast %cst : f32 to vector<32x32xf32>
    %c0_i32 = arith.constant 0 : i32
    %15 = vector.broadcast %c0_i32 : i32 to vector<32x32xi32>
    %16 = arith.cmpi sge, %12, %15 : vector<32x32xi32>
    %c4_i32 = arith.constant 4 : i32
    %17 = vector.broadcast %c4_i32 : i32 to vector<32x32xi32>
    %18 = arith.cmpi slt, %12, %17 : vector<32x32xi32>
    %19 = arith.andi %16, %18 : vector<32x32xi1>
    %c0_i32_7 = arith.constant 0 : i32
    %20 = vector.broadcast %c0_i32_7 : i32 to vector<32x32xi32>
    %21 = arith.cmpi sge, %13, %20 : vector<32x32xi32>
    %22 = arith.andi %19, %21 : vector<32x32xi1>
    %c4_i32_8 = arith.constant 4 : i32
    %23 = vector.broadcast %c4_i32_8 : i32 to vector<32x32xi32>
    %24 = arith.cmpi slt, %13, %23 : vector<32x32xi32>
    %25 = arith.andi %22, %24 : vector<32x32xi1>
    %26 = arith.extui %25 : vector<32x32xi1> to vector<32x32xi32>
    %27 = arith.sitofp %26 : vector<32x32xi32> to vector<32x32xf32>
    %28 = arith.addf %14, %27 : vector<32x32xf32>
    %c4_i32_9 = arith.constant 4 : i32
    %29 = vector.broadcast %c4_i32_9 : i32 to vector<32x32xi32>
    %30 = arith.cmpi sge, %12, %29 : vector<32x32xi32>
    %c8_i32 = arith.constant 8 : i32
    %31 = vector.broadcast %c8_i32 : i32 to vector<32x32xi32>
    %32 = arith.cmpi slt, %12, %31 : vector<32x32xi32>
    %33 = arith.andi %30, %32 : vector<32x32xi1>
    %c4_i32_10 = arith.constant 4 : i32
    %34 = vector.broadcast %c4_i32_10 : i32 to vector<32x32xi32>
    %35 = arith.cmpi sge, %13, %34 : vector<32x32xi32>
    %36 = arith.andi %33, %35 : vector<32x32xi1>
    %c8_i32_11 = arith.constant 8 : i32
    %37 = vector.broadcast %c8_i32_11 : i32 to vector<32x32xi32>
    %38 = arith.cmpi slt, %13, %37 : vector<32x32xi32>
    %39 = arith.andi %36, %38 : vector<32x32xi1>
    %40 = arith.extui %39 : vector<32x32xi1> to vector<32x32xi32>
    %41 = arith.sitofp %40 : vector<32x32xi32> to vector<32x32xf32>
    %42 = arith.addf %28, %41 : vector<32x32xf32>
    %c8_i32_12 = arith.constant 8 : i32
    %43 = vector.broadcast %c8_i32_12 : i32 to vector<32x32xi32>
    %44 = arith.cmpi sge, %12, %43 : vector<32x32xi32>
    %c12_i32 = arith.constant 12 : i32
    %45 = vector.broadcast %c12_i32 : i32 to vector<32x32xi32>
    %46 = arith.cmpi slt, %12, %45 : vector<32x32xi32>
    %47 = arith.andi %44, %46 : vector<32x32xi1>
    %c8_i32_13 = arith.constant 8 : i32
    %48 = vector.broadcast %c8_i32_13 : i32 to vector<32x32xi32>
    %49 = arith.cmpi sge, %13, %48 : vector<32x32xi32>
    %50 = arith.andi %47, %49 : vector<32x32xi1>
    %c12_i32_14 = arith.constant 12 : i32
    %51 = vector.broadcast %c12_i32_14 : i32 to vector<32x32xi32>
    %52 = arith.cmpi slt, %13, %51 : vector<32x32xi32>
    %53 = arith.andi %50, %52 : vector<32x32xi1>
    %54 = arith.extui %53 : vector<32x32xi1> to vector<32x32xi32>
    %55 = arith.sitofp %54 : vector<32x32xi32> to vector<32x32xf32>
    %56 = arith.addf %42, %55 : vector<32x32xf32>
    %c12_i32_15 = arith.constant 12 : i32
    %57 = vector.broadcast %c12_i32_15 : i32 to vector<32x32xi32>
    %58 = arith.cmpi sge, %12, %57 : vector<32x32xi32>
    %c16_i32 = arith.constant 16 : i32
    %59 = vector.broadcast %c16_i32 : i32 to vector<32x32xi32>
    %60 = arith.cmpi slt, %12, %59 : vector<32x32xi32>
    %61 = arith.andi %58, %60 : vector<32x32xi1>
    %c12_i32_16 = arith.constant 12 : i32
    %62 = vector.broadcast %c12_i32_16 : i32 to vector<32x32xi32>
    %63 = arith.cmpi sge, %13, %62 : vector<32x32xi32>
    %64 = arith.andi %61, %63 : vector<32x32xi1>
    %c16_i32_17 = arith.constant 16 : i32
    %65 = vector.broadcast %c16_i32_17 : i32 to vector<32x32xi32>
    %66 = arith.cmpi slt, %13, %65 : vector<32x32xi32>
    %67 = arith.andi %64, %66 : vector<32x32xi1>
    %68 = arith.extui %67 : vector<32x32xi1> to vector<32x32xi32>
    %69 = arith.sitofp %68 : vector<32x32xi32> to vector<32x32xf32>
    %70 = arith.addf %56, %69 : vector<32x32xf32>
    %c16_i32_18 = arith.constant 16 : i32
    %71 = vector.broadcast %c16_i32_18 : i32 to vector<32x32xi32>
    %72 = arith.cmpi sge, %12, %71 : vector<32x32xi32>
    %c20_i32 = arith.constant 20 : i32
    %73 = vector.broadcast %c20_i32 : i32 to vector<32x32xi32>
    %74 = arith.cmpi slt, %12, %73 : vector<32x32xi32>
    %75 = arith.andi %72, %74 : vector<32x32xi1>
    %c16_i32_19 = arith.constant 16 : i32
    %76 = vector.broadcast %c16_i32_19 : i32 to vector<32x32xi32>
    %77 = arith.cmpi sge, %13, %76 : vector<32x32xi32>
    %78 = arith.andi %75, %77 : vector<32x32xi1>
    %c20_i32_20 = arith.constant 20 : i32
    %79 = vector.broadcast %c20_i32_20 : i32 to vector<32x32xi32>
    %80 = arith.cmpi slt, %13, %79 : vector<32x32xi32>
    %81 = arith.andi %78, %80 : vector<32x32xi1>
    %82 = arith.extui %81 : vector<32x32xi1> to vector<32x32xi32>
    %83 = arith.sitofp %82 : vector<32x32xi32> to vector<32x32xf32>
    %84 = arith.addf %70, %83 : vector<32x32xf32>
    %c20_i32_21 = arith.constant 20 : i32
    %85 = vector.broadcast %c20_i32_21 : i32 to vector<32x32xi32>
    %86 = arith.cmpi sge, %12, %85 : vector<32x32xi32>
    %c24_i32 = arith.constant 24 : i32
    %87 = vector.broadcast %c24_i32 : i32 to vector<32x32xi32>
    %88 = arith.cmpi slt, %12, %87 : vector<32x32xi32>
    %89 = arith.andi %86, %88 : vector<32x32xi1>
    %c20_i32_22 = arith.constant 20 : i32
    %90 = vector.broadcast %c20_i32_22 : i32 to vector<32x32xi32>
    %91 = arith.cmpi sge, %13, %90 : vector<32x32xi32>
    %92 = arith.andi %89, %91 : vector<32x32xi1>
    %c24_i32_23 = arith.constant 24 : i32
    %93 = vector.broadcast %c24_i32_23 : i32 to vector<32x32xi32>
    %94 = arith.cmpi slt, %13, %93 : vector<32x32xi32>
    %95 = arith.andi %92, %94 : vector<32x32xi1>
    %96 = arith.extui %95 : vector<32x32xi1> to vector<32x32xi32>
    %97 = arith.sitofp %96 : vector<32x32xi32> to vector<32x32xf32>
    %98 = arith.addf %84, %97 : vector<32x32xf32>
    %c24_i32_24 = arith.constant 24 : i32
    %99 = vector.broadcast %c24_i32_24 : i32 to vector<32x32xi32>
    %100 = arith.cmpi sge, %12, %99 : vector<32x32xi32>
    %c28_i32 = arith.constant 28 : i32
    %101 = vector.broadcast %c28_i32 : i32 to vector<32x32xi32>
    %102 = arith.cmpi slt, %12, %101 : vector<32x32xi32>
    %103 = arith.andi %100, %102 : vector<32x32xi1>
    %c24_i32_25 = arith.constant 24 : i32
    %104 = vector.broadcast %c24_i32_25 : i32 to vector<32x32xi32>
    %105 = arith.cmpi sge, %13, %104 : vector<32x32xi32>
    %106 = arith.andi %103, %105 : vector<32x32xi1>
    %c28_i32_26 = arith.constant 28 : i32
    %107 = vector.broadcast %c28_i32_26 : i32 to vector<32x32xi32>
    %108 = arith.cmpi slt, %13, %107 : vector<32x32xi32>
    %109 = arith.andi %106, %108 : vector<32x32xi1>
    %110 = arith.extui %109 : vector<32x32xi1> to vector<32x32xi32>
    %111 = arith.sitofp %110 : vector<32x32xi32> to vector<32x32xf32>
    %112 = arith.addf %98, %111 : vector<32x32xf32>
    %c28_i32_27 = arith.constant 28 : i32
    %113 = vector.broadcast %c28_i32_27 : i32 to vector<32x32xi32>
    %114 = arith.cmpi sge, %12, %113 : vector<32x32xi32>
    %c32_i32 = arith.constant 32 : i32
    %115 = vector.broadcast %c32_i32 : i32 to vector<32x32xi32>
    %116 = arith.cmpi slt, %12, %115 : vector<32x32xi32>
    %117 = arith.andi %114, %116 : vector<32x32xi1>
    %c28_i32_28 = arith.constant 28 : i32
    %118 = vector.broadcast %c28_i32_28 : i32 to vector<32x32xi32>
    %119 = arith.cmpi sge, %13, %118 : vector<32x32xi32>
    %120 = arith.andi %117, %119 : vector<32x32xi1>
    %c32_i32_29 = arith.constant 32 : i32
    %121 = vector.broadcast %c32_i32_29 : i32 to vector<32x32xi32>
    %122 = arith.cmpi slt, %13, %121 : vector<32x32xi32>
    %123 = arith.andi %120, %122 : vector<32x32xi1>
    %124 = arith.extui %123 : vector<32x32xi1> to vector<32x32xi32>
    %125 = arith.sitofp %124 : vector<32x32xi32> to vector<32x32xf32>
    %126 = arith.addf %112, %125 : vector<32x32xf32>
    %cst_30 = arith.constant dense<0.000000e+00> : vector<32x256xf32>
    %127 = tpu.matmul %126, %1, %cst_30 {dimension_numbers = #tpu.dot_dimension_numbers<[1], [0], [0], [1], [0, 0, 1, 1], [], []>} : vector<32x32xf32>, vector<32x256xf32>, vector<32x256xf32> -> vector<32x256xf32>
    %cst_31 = arith.constant dense<0.000000e+00> : vector<32xf32>
    %128 = vector.multi_reduction <add>, %127, %cst_31 [1] : vector<32x256xf32> to vector<32xf32>
    %129 = vector.shape_cast %128 : vector<32xf32> to vector<32x1xf32>
    %cst_32 = arith.constant 9.765625E-4 : f32
    %130 = vector.broadcast %cst_32 : f32 to vector<32x1xf32>
    %131 = arith.mulf %129, %130 : vector<32x1xf32>
    %132 = vector.broadcast %131 : vector<32x1xf32> to vector<32x256xf32>
    %133 = arith.subf %1, %132 : vector<32x256xf32>
    %134 = arith.mulf %133, %133 : vector<32x256xf32>
    %cst_33 = arith.constant dense<0.000000e+00> : vector<32x256xf32>
    %135 = tpu.matmul %126, %134, %cst_33 {dimension_numbers = #tpu.dot_dimension_numbers<[1], [0], [0], [1], [0, 0, 1, 1], [], []>} : vector<32x32xf32>, vector<32x256xf32>, vector<32x256xf32> -> vector<32x256xf32>
    %cst_34 = arith.constant dense<0.000000e+00> : vector<32xf32>
    %136 = vector.multi_reduction <add>, %135, %cst_34 [1] : vector<32x256xf32> to vector<32xf32>
    %137 = vector.shape_cast %136 : vector<32xf32> to vector<32x1xf32>
    %cst_35 = arith.constant 9.765625E-4 : f32
    %138 = vector.broadcast %cst_35 : f32 to vector<32x1xf32>
    %139 = arith.mulf %137, %138 : vector<32x1xf32>
    %cst_36 = arith.constant 9.99999974E-6 : f32
    %140 = vector.broadcast %cst_36 : f32 to vector<32x1xf32>
    %141 = arith.addf %139, %140 : vector<32x1xf32>
    %142 = math.rsqrt %141 : vector<32x1xf32>
    %143 = vector.broadcast %142 : vector<32x1xf32> to vector<32x256xf32>
    %144 = arith.mulf %133, %143 : vector<32x256xf32>
    %145 = vector.broadcast %8 : vector<32x1xf32> to vector<32x256xf32>
    %146 = arith.mulf %144, %145 : vector<32x256xf32>
    %147 = vector.broadcast %9 : vector<32x1xf32> to vector<32x256xf32>
    %148 = arith.addf %146, %147 : vector<32x256xf32>
    %c0_37 = arith.constant 0 : index
    %c0_38 = arith.constant 0 : index
    %149 = vector.load %arg3[%c0_37, %c0_38] : memref<16x32xbf16, #tpu.memory_space<vmem>>, vector<16x32xbf16>
    %150 = arith.truncf %148 : vector<32x256xf32> to vector<32x256xbf16>
    %cst_39 = arith.constant dense<0.000000e+00> : vector<16x256xf32>
    %151 = tpu.matmul %149, %150, %cst_39 {dimension_numbers = #tpu.dot_dimension_numbers<[1], [0], [0], [1], [0, 0, 1, 1], [], []>} : vector<16x32xbf16>, vector<32x256xbf16>, vector<16x256xf32> -> vector<16x256xf32>
    %152 = vector.broadcast %5 : vector<16x1xf32> to vector<16x256xf32>
    %153 = arith.addf %151, %152 : vector<16x256xf32>
    %c0_40 = arith.constant 0 : index
    %c0_41 = arith.constant 0 : index
    %154 = vector.load %arg4[%c0_40, %c0_41] : memref<32x64xbf16, #tpu.memory_space<vmem>>, vector<32x64xbf16>
    %cst_42 = arith.constant dense<0.000000e+00> : vector<32x256xf32>
    %155 = tpu.matmul %154, %3, %cst_42 {dimension_numbers = #tpu.dot_dimension_numbers<[1], [0], [0], [1], [0, 0, 1, 1], [], []>} : vector<32x64xbf16>, vector<64x256xbf16>, vector<32x256xf32> -> vector<32x256xf32>
    %156 = vector.broadcast %6 : vector<32x1xf32> to vector<32x256xf32>
    %157 = arith.addf %155, %156 : vector<32x256xf32>
    %158 = vector.extract_strided_slice %157 {offsets = [0, 0], sizes = [16, 256], strides = [1, 1]} : vector<32x256xf32> to vector<16x256xf32>
    %159 = vector.extract_strided_slice %157 {offsets = [16, 0], sizes = [16, 256], strides = [1, 1]} : vector<32x256xf32> to vector<16x256xf32>
    %160 = arith.truncf %153 : vector<16x256xf32> to vector<16x256xbf16>
    %161 = arith.truncf %158 : vector<16x256xf32> to vector<16x256xbf16>
    %cst_43 = arith.constant dense<0.000000e+00> : vector<256x256xf32>
    %162 = tpu.matmul %160, %161, %cst_43 {dimension_numbers = #tpu.dot_dimension_numbers<[0], [0], [1], [1], [0, 1, 1, 1], [], []>} : vector<16x256xbf16>, vector<16x256xbf16>, vector<256x256xf32> -> vector<256x256xf32>
    %cst_44 = arith.constant dense<0xFF800000> : vector<256xf32>
    %163 = vector.multi_reduction <maximumf>, %162, %cst_44 [1] : vector<256x256xf32> to vector<256xf32>
    %164 = vector.shape_cast %163 : vector<256xf32> to vector<256x1xf32>
    %165 = vector.broadcast %164 : vector<256x1xf32> to vector<256x256xf32>
    %166 = arith.subf %162, %165 : vector<256x256xf32>
    %167 = math.exp %166 : vector<256x256xf32>
    %cst_45 = arith.constant dense<0.000000e+00> : vector<256xf32>
    %168 = vector.multi_reduction <add>, %167, %cst_45 [1] : vector<256x256xf32> to vector<256xf32>
    %169 = vector.shape_cast %168 : vector<256xf32> to vector<256x1xf32>
    %170 = arith.truncf %167 : vector<256x256xf32> to vector<256x256xbf16>
    %171 = arith.truncf %159 : vector<16x256xf32> to vector<16x256xbf16>
    %cst_46 = arith.constant dense<0.000000e+00> : vector<256x16xf32>
    %172 = tpu.matmul %170, %171, %cst_46 {dimension_numbers = #tpu.dot_dimension_numbers<[1], [1], [0], [0], [0, 0, 1, 0], [], []>} : vector<256x256xbf16>, vector<16x256xbf16>, vector<256x16xf32> -> vector<256x16xf32>
    %173 = tpu.reciprocal %169 {approx = true} : vector<256x1xf32> -> vector<256x1xf32>
    %174 = vector.broadcast %173 : vector<256x1xf32> to vector<256x16xf32>
    %175 = arith.mulf %172, %174 : vector<256x16xf32>
    %c0_47 = arith.constant 0 : index
    %c0_48 = arith.constant 0 : index
    %176 = vector.load %arg5[%c0_47, %c0_48] : memref<32x16xbf16, #tpu.memory_space<vmem>>, vector<32x16xbf16>
    %177 = arith.truncf %175 : vector<256x16xf32> to vector<256x16xbf16>
    %cst_49 = arith.constant dense<0.000000e+00> : vector<32x256xf32>
    %178 = tpu.matmul %176, %177, %cst_49 {dimension_numbers = #tpu.dot_dimension_numbers<[1], [1], [0], [0], [0, 0, 1, 0], [], []>} : vector<32x16xbf16>, vector<256x16xbf16>, vector<32x256xf32> -> vector<32x256xf32>
    %179 = vector.broadcast %7 : vector<32x1xf32> to vector<32x256xf32>
    %180 = arith.addf %178, %179 : vector<32x256xf32>
    %181 = arith.addf %180, %1 : vector<32x256xf32>
    %cst_50 = arith.constant dense<0.000000e+00> : vector<32x256xf32>
    %182 = tpu.matmul %126, %181, %cst_50 {dimension_numbers = #tpu.dot_dimension_numbers<[1], [0], [0], [1], [0, 0, 1, 1], [], []>} : vector<32x32xf32>, vector<32x256xf32>, vector<32x256xf32> -> vector<32x256xf32>
    %cst_51 = arith.constant dense<0.000000e+00> : vector<32xf32>
    %183 = vector.multi_reduction <add>, %182, %cst_51 [1] : vector<32x256xf32> to vector<32xf32>
    %184 = vector.shape_cast %183 : vector<32xf32> to vector<32x1xf32>
    %cst_52 = arith.constant 9.765625E-4 : f32
    %185 = vector.broadcast %cst_52 : f32 to vector<32x1xf32>
    %186 = arith.mulf %184, %185 : vector<32x1xf32>
    %187 = vector.broadcast %186 : vector<32x1xf32> to vector<32x256xf32>
    %188 = arith.subf %181, %187 : vector<32x256xf32>
    %189 = arith.mulf %188, %188 : vector<32x256xf32>
    %cst_53 = arith.constant dense<0.000000e+00> : vector<32x256xf32>
    %190 = tpu.matmul %126, %189, %cst_53 {dimension_numbers = #tpu.dot_dimension_numbers<[1], [0], [0], [1], [0, 0, 1, 1], [], []>} : vector<32x32xf32>, vector<32x256xf32>, vector<32x256xf32> -> vector<32x256xf32>
    %cst_54 = arith.constant dense<0.000000e+00> : vector<32xf32>
    %191 = vector.multi_reduction <add>, %190, %cst_54 [1] : vector<32x256xf32> to vector<32xf32>
    %192 = vector.shape_cast %191 : vector<32xf32> to vector<32x1xf32>
    %cst_55 = arith.constant 9.765625E-4 : f32
    %193 = vector.broadcast %cst_55 : f32 to vector<32x1xf32>
    %194 = arith.mulf %192, %193 : vector<32x1xf32>
    %cst_56 = arith.constant 9.99999974E-6 : f32
    %195 = vector.broadcast %cst_56 : f32 to vector<32x1xf32>
    %196 = arith.addf %194, %195 : vector<32x1xf32>
    %197 = math.rsqrt %196 : vector<32x1xf32>
    %198 = vector.broadcast %197 : vector<32x1xf32> to vector<32x256xf32>
    %199 = arith.mulf %188, %198 : vector<32x256xf32>
    %200 = vector.broadcast %10 : vector<32x1xf32> to vector<32x256xf32>
    %201 = arith.mulf %199, %200 : vector<32x256xf32>
    %202 = vector.broadcast %11 : vector<32x1xf32> to vector<32x256xf32>
    %203 = arith.addf %201, %202 : vector<32x256xf32>
    %c0_57 = arith.constant 0 : index
    %c0_58 = arith.constant 0 : index
    %c0_59 = arith.constant 0 : index
    %204 = vector.load %arg7[%c0_57, %c0_58, %c0_59] : memref<1x32x256xf32, #tpu.memory_space<vmem>>, vector<1x32x256xf32>
    %205 = vector.shape_cast %204 : vector<1x32x256xf32> to vector<32x256xf32>
    %206 = vector.shape_cast %203 : vector<32x256xf32> to vector<1x32x256xf32>
    tpu.vector_store %arg7[%c0_57, %c0_58, %c0_59], %206 {strides = array<i32>} : memref<1x32x256xf32, #tpu.memory_space<vmem>>, vector<1x32x256xf32>,
    return
  }
  func.func @transform_0(%arg0: i32) -> (i32, i32, i32) {
    %c0_i32 = arith.constant 0 : i32
    %c0_i32_0 = arith.constant 0 : i32
    %c0_i32_1 = arith.constant 0 : i32
    return %arg0, %c0_i32, %c0_i32_0 : i32, i32, i32
  }
  func.func @transform_1(%arg0: i32) -> (i32, i32, i32) {
    %c0_i32 = arith.constant 0 : i32
    %c0_i32_0 = arith.constant 0 : i32
    %c0_i32_1 = arith.constant 0 : i32
    return %arg0, %c0_i32, %c0_i32_0 : i32, i32, i32
  }
  func.func @transform_2(%arg0: i32) -> (i32, i32) {
    %c0_i32 = arith.constant 0 : i32
    %c0_i32_0 = arith.constant 0 : i32
    %c0_i32_1 = arith.constant 0 : i32
    return %c0_i32, %c0_i32_0 : i32, i32
  }
  func.func @transform_3(%arg0: i32) -> (i32, i32) {
    %c0_i32 = arith.constant 0 : i32
    %c0_i32_0 = arith.constant 0 : i32
    %c0_i32_1 = arith.constant 0 : i32
    return %c0_i32, %c0_i32_0 : i32, i32
  }
  func.func @transform_4(%arg0: i32) -> (i32, i32) {
    %c0_i32 = arith.constant 0 : i32
    %c0_i32_0 = arith.constant 0 : i32
    %c0_i32_1 = arith.constant 0 : i32
    return %c0_i32, %c0_i32_0 : i32, i32
  }
  func.func @transform_5(%arg0: i32) -> (i32, i32) {
    %c0_i32 = arith.constant 0 : i32
    %c0_i32_0 = arith.constant 0 : i32
    %c0_i32_1 = arith.constant 0 : i32
    return %c0_i32, %c0_i32_0 : i32, i32
  }
  func.func @transform_6(%arg0: i32) -> (i32, i32, i32) {
    %c0_i32 = arith.constant 0 : i32
    %c0_i32_0 = arith.constant 0 : i32
    %c0_i32_1 = arith.constant 0 : i32
    return %arg0, %c0_i32, %c0_i32_0 : i32, i32, i32
  }
}

</mosaic_0001>

<llo_original>
// kernel: cross_attention_block.1
$region0: #{cross_attention_block.1}
  #allocation0 [shape = 'u32[]', space=smem, size = 0x4, offset = 0x4, fixed_abs, tag = 'smem constant byte address 0x4 - core index']
  #allocation1 [shape = 'u32[144,128]{1,0:T(1,128)}', space=vmem, size = 0x12000, scoped, tag = 'internal scratch']
  %s0 = inlined_call_operand.vmem [shape: f32[2,32,256], index: 0, kind: input, shape index: {}]
  %s1 = inlined_call_operand.vmem [shape: bf16[2,64,256], index: 1, kind: input, shape index: {}]
  %s2 = inlined_call_operand.vmem [shape: bf16[16,32], index: 2, kind: input, shape index: {}]
  %s3 = inlined_call_operand.vmem [shape: bf16[32,64], index: 3, kind: input, shape index: {}]
  %s4 = inlined_call_operand.vmem [shape: bf16[32,16], index: 4, kind: input, shape index: {}]
  %s5 = inlined_call_operand.vmem [shape: f32[32,8], index: 5, kind: input, shape index: {}]
  %s6 = inlined_call_operand.vmem [shape: f32[2,32,256], index: 6, kind: output, shape index: {}]
  %s7 = sld [smem:[#allocation0]]
  $region57: #{cross_attention_block.1} parent=0
    _
  %s9 = ssub.s32 1, %s7
  %s10 = scalar_select 0, %s9, %s7
  loop: start=0, step=1, limit=4
  $region2: #{cross_attention_block.1} parent=0 // loop_pre_header
    _
  $region3: #{cross_attention_block.1} parent=0 // loop_header
    %s12 = sphi 0, %s16
    %p13 = scmp.ge.s32.totalorder %s12, 4
    %s22 = sphi 0, %s24
    %s25 = sphi 0, %s22
    %s26 = sphi 0, %s25
    %s42 = sphi 0, %s26
    %s48 = sphi 0, %s50
    %s51 = sphi 0, %s48
    %s52 = sphi 0, %s51
    %s68 = sphi 0, %s52
    %s72 = sphi 0, %s72
    %s74 = sphi 0, %s72
    %s75 = sphi 0, %s74
    %s89 = sphi 0, %s75
    %s93 = sphi 0, %s93
    %s95 = sphi 0, %s93
    %s96 = sphi 0, %s95
    %s110 = sphi 0, %s96
    %s114 = sphi 0, %s114
    %s116 = sphi 0, %s114
    %s117 = sphi 0, %s116
    %s131 = sphi 0, %s117
    %s135 = sphi 0, %s135
    %s137 = sphi 0, %s135
    %s138 = sphi 0, %s137
    %s152 = sphi 0, %s138
    %s158 = sphi 0, %s160
    %s161 = sphi 0, %s158
    %s162 = sphi 0, %s161
    %s178 = sphi 0, %s162
  $region4: #{cross_attention_block.1} parent=0 // loop_header_branch
    %15 = sbr.rel (%p13) target = $region8
  $region5: #{cross_attention_block.1} parent=0 // loop_body
    %s17 = ssub.s32 %s12, 1
    %s18 = ssub.s32 %s12, 2
    %s19 = sadd.s32 %s12, 1
    %s20 = ssub.s32 %s12, %s19
    %p21 = scmp.eq.s32.totalorder %s20, 0
    %s23 = sadd.s32 %s22, 1
    %s24 = scalar_select %p21, %s22, %s23
    %p27 = pneg %p21
    %p28 = scmp.eq.s32.totalorder %s12, 1
    %p29 = por %p27, %p28
    %p30 = scmp.ne.s32.totalorder %s22, %s25
    %p31 = scmp.eq.s32.totalorder %s12, 0
    %p32 = por %p30, %p31
    %p33 = scmp.ne.s32.totalorder %s22, %s25
    %p34 = scmp.eq.s32.totalorder %s17, 1
    %p35 = por %p33, %p34
    %p36 = scmp.ne.s32.totalorder %s25, %s26
    %p37 = scmp.eq.s32.totalorder %s17, 0
    %p38 = por %p36, %p37
    %p39 = scmp.ne.s32.totalorder %s25, %s26
    %p40 = scmp.eq.s32.totalorder %s18, 1
    %p41 = por %p39, %p40
    %p43 = scmp.ne.s32.totalorder %s26, %s42
    %p44 = scmp.eq.s32.totalorder %s18, 0
    %p45 = por %p43, %p44
    %s46 = ssub.s32 %s12, %s19
    %p47 = scmp.eq.s32.totalorder %s46, 0
    %s49 = sadd.s32 %s48, 1
    %s50 = scalar_select %p47, %s48, %s49
    %p53 = pneg %p47
    %p54 = scmp.eq.s32.totalorder %s12, 1
    %p55 = por %p53, %p54
    %p56 = scmp.ne.s32.totalorder %s48, %s51
    %p57 = scmp.eq.s32.totalorder %s12, 0
    %p58 = por %p56, %p57
    %p59 = scmp.ne.s32.totalorder %s48, %s51
    %p60 = scmp.eq.s32.totalorder %s17, 1
    %p61 = por %p59, %p60
    %p62 = scmp.ne.s32.totalorder %s51, %s52
    %p63 = scmp.eq.s32.totalorder %s17, 0
    %p64 = por %p62, %p63
    %p65 = scmp.ne.s32.totalorder %s51, %s52
    %p66 = scmp.eq.s32.totalorder %s18, 1
    %p67 = por %p65, %p66
    %p69 = scmp.ne.s32.totalorder %s52, %s68
    %p70 = scmp.eq.s32.totalorder %s18, 0
    %p71 = por %p69, %p70
    %s73 = sadd.s32 %s72, 1
    %p76 = scmp.eq.s32.totalorder %s12, 1
    %p77 = scmp.ne.s32.totalorder %s72, %s74
    %p78 = scmp.eq.s32.totalorder %s12, 0
    %p79 = por %p77, %p78
    %p80 = scmp.ne.s32.totalorder %s72, %s74
    %p81 = scmp.eq.s32.totalorder %s17, 1
    %p82 = por %p80, %p81
    %p83 = scmp.ne.s32.totalorder %s74, %s75
    %p84 = scmp.eq.s32.totalorder %s17, 0
    %p85 = por %p83, %p84
    %p86 = scmp.ne.s32.totalorder %s74, %s75
    %p87 = scmp.eq.s32.totalorder %s18, 1
    %p88 = por %p86, %p87
    %p90 = scmp.ne.s32.totalorder %s75, %s89
    %p91 = scmp.eq.s32.totalorder %s18, 0
    %p92 = por %p90, %p91
    %s94 = sadd.s32 %s93, 1
    %p97 = scmp.eq.s32.totalorder %s12, 1
    %p98 = scmp.ne.s32.totalorder %s93, %s95
    %p99 = scmp.eq.s32.totalorder %s12, 0
    %p100 = por %p98, %p99
    %p101 = scmp.ne.s32.totalorder %s93, %s95
    %p102 = scmp.eq.s32.totalorder %s17, 1
    %p103 = por %p101, %p102
    %p104 = scmp.ne.s32.totalorder %s95, %s96
    %p105 = scmp.eq.s32.totalorder %s17, 0
    %p106 = por %p104, %p105
    %p107 = scmp.ne.s32.totalorder %s95, %s96
    %p108 = scmp.eq.s32.totalorder %s18, 1
    %p109 = por %p107, %p108
    %p111 = scmp.ne.s32.totalorder %s96, %s110
    %p112 = scmp.eq.s32.totalorder %s18, 0
    %p113 = por %p111, %p112
    %s115 = sadd.s32 %s114, 1
    %p118 = scmp.eq.s32.totalorder %s12, 1
    %p119 = scmp.ne.s32.totalorder %s114, %s116
    %p120 = scmp.eq.s32.totalorder %s12, 0
    %p121 = por %p119, %p120
    %p122 = scmp.ne.s32.totalorder %s114, %s116
    %p123 = scmp.eq.s32.totalorder %s17, 1
    %p124 = por %p122, %p123
    %p125 = scmp.ne.s32.totalorder %s116, %s117
    %p126 = scmp.eq.s32.totalorder %s17, 0
    %p127 = por %p125, %p126
    %p128 = scmp.ne.s32.totalorder %s116, %s117
    %p129 = scmp.eq.s32.totalorder %s18, 1
    %p130 = por %p128, %p129
    %p132 = scmp.ne.s32.totalorder %s117, %s131
    %p133 = scmp.eq.s32.totalorder %s18, 0
    %p134 = por %p132, %p133
    %s136 = sadd.s32 %s135, 1
    %p139 = scmp.eq.s32.totalorder %s12, 1
    %p140 = scmp.ne.s32.totalorder %s135, %s137
    %p141 = scmp.eq.s32.totalorder %s12, 0
    %p142 = por %p140, %p141
    %p143 = scmp.ne.s32.totalorder %s135, %s137
    %p144 = scmp.eq.s32.totalorder %s17, 1
    %p145 = por %p143, %p144
    %p146 = scmp.ne.s32.totalorder %s137, %s138
    %p147 = scmp.eq.s32.totalorder %s17, 0
    %p148 = por %p146, %p147
    %p149 = scmp.ne.s32.totalorder %s137, %s138
    %p150 = scmp.eq.s32.totalorder %s18, 1
    %p151 = por %p149, %p150
    %p153 = scmp.ne.s32.totalorder %s138, %s152
    %p154 = scmp.eq.s32.totalorder %s18, 0
    %p155 = por %p153, %p154
    %s156 = ssub.s32 %s12, %s19
    %p157 = scmp.eq.s32.totalorder %s156, 0
    %s159 = sadd.s32 %s158, 1
    %s160 = scalar_select %p157, %s158, %s159
    %p163 = pneg %p157
    %p164 = scmp.eq.s32.totalorder %s12, 1
    %p165 = por %p163, %p164
    %p166 = scmp.ne.s32.totalorder %s158, %s161
    %p167 = scmp.eq.s32.totalorder %s12, 0
    %p168 = por %p166, %p167
    %p169 = scmp.ne.s32.totalorder %s158, %s161
    %p170 = scmp.eq.s32.totalorder %s17, 1
    %p171 = por %p169, %p170
    %p172 = scmp.ne.s32.totalorder %s161, %s162
    %p173 = scmp.eq.s32.totalorder %s17, 0
    %p174 = por %p172, %p173
    %p175 = scmp.ne.s32.totalorder %s161, %s162
    %p176 = scmp.eq.s32.totalorder %s18, 1
    %p177 = por %p175, %p176
    %p179 = scmp.ne.s32.totalorder %s162, %s178
    %p180 = scmp.eq.s32.totalorder %s18, 0
    %p181 = por %p179, %p180
    %p182 = scmp.le.s32.totalorder 1, %s12
    %p183 = scmp.lt.s32.totalorder %s12, 3
    %p184 = pnand %p182, %p183
    %p185 = pneg %p184
    // Predicated region
    $region9: #{cross_attention_block.1} parent=5 // pred_check
      _
    $region10: #{cross_attention_block.1} parent=5 // pred_check_branch
      %187 = sbr.rel (%p184) target = $region12
    $region11: #{cross_attention_block.1} parent=5 // pred_region
      %s188 = ssub.s32 %s12, 1
      // Predicated region
      $region13: #{cross_attention_block.1} parent=11 // pred_check
        %p189 = pneg %p85
      $region14: #{cross_attention_block.1} parent=11 // pred_check_branch
        %191 = sbr.rel (%p189) target = $region16
      $region15: #{cross_attention_block.1} parent=11 // pred_region
        _
      $region16: #{cross_attention_block.1} parent=11 // pred_fallthru
        _
      // Predicated region
      $region17: #{cross_attention_block.1} parent=11 // pred_check
        %p192 = pneg %p106
      $region18: #{cross_attention_block.1} parent=11 // pred_check_branch
        %194 = sbr.rel (%p192) target = $region20
      $region19: #{cross_attention_block.1} parent=11 // pred_region
        _
      $region20: #{cross_attention_block.1} parent=11 // pred_fallthru
        _
      // Predicated region
      $region21: #{cross_attention_block.1} parent=11 // pred_check
        %p195 = pneg %p127
      $region22: #{cross_attention_block.1} parent=11 // pred_check_branch
        %197 = sbr.rel (%p195) target = $region24
      $region23: #{cross_attention_block.1} parent=11 // pred_region
        _
      $region24: #{cross_attention_block.1} parent=11 // pred_fallthru
        _
      // Predicated region
      $region25: #{cross_attention_block.1} parent=11 // pred_check
        %p198 = pneg %p148
      $region26: #{cross_attention_block.1} parent=11 // pred_check_branch
        %200 = sbr.rel (%p198) target = $region28
      $region27: #{cross_attention_block.1} parent=11 // pred_region
        _
      $region28: #{cross_attention_block.1} parent=11 // pred_fallthru
        _
    $region12: #{cross_attention_block.1} parent=5 // pred_fallthru
      _
    %p201 = scmp.lt.s32.totalorder %s12, 2
    // Predicated region
    $region29: #{cross_attention_block.1} parent=5 // pred_check
      %p202 = pneg %p201
    $region30: #{cross_attention_block.1} parent=5 // pred_check_branch
      %204 = sbr.rel (%p202) target = $region32
    $region31: #{cross_attention_block.1} parent=5 // pred_region
      // Predicated region
      $region33: #{cross_attention_block.1} parent=31 // pred_check
        %p205 = pneg %p32
      $region34: #{cross_attention_block.1} parent=31 // pred_check_branch
        %207 = sbr.rel (%p205) target = $region36
      $region35: #{cross_attention_block.1} parent=31 // pred_region
        %p208 = scmp.lt.s32.totalorder %s12, 1
        %s209 = scalar_select %p208, %s12, 1
        %s210 = smul.addr %s209, 8
        %s211 = smul.addr %s210, 8
        %s212 = scalar_lea.vmem %s0, %s211
      $region36: #{cross_attention_block.1} parent=31 // pred_fallthru
        _
      // Predicated region
      $region37: #{cross_attention_block.1} parent=31 // pred_check
        %p213 = pneg %p58
      $region38: #{cross_attention_block.1} parent=31 // pred_check_branch
        %215 = sbr.rel (%p213) target = $region40
      $region39: #{cross_attention_block.1} parent=31 // pred_region
        %p216 = scmp.lt.s32.totalorder %s12, 1
        %s217 = scalar_select %p216, %s12, 1
        %s218 = smul.addr %s217, 16
        %s219 = smul.addr %s218, 4
        %s220 = scalar_lea.vmem %s1, %s219
      $region40: #{cross_attention_block.1} parent=31 // pred_fallthru
        _
    $region32: #{cross_attention_block.1} parent=5 // pred_fallthru
      _
    %p221 = scmp.le.s32.totalorder 1, %s12
    %p222 = scmp.lt.s32.totalorder %s12, 3
    %p223 = pnand %p221, %p222
    %p224 = pneg %p223
    // Predicated region
    $region41: #{cross_attention_block.1} parent=5 // pred_check
      _
    $region42: #{cross_attention_block.1} parent=5 // pred_check_branch
      %226 = sbr.rel (%p223) target = $region44
    $region43: #{cross_attention_block.1} parent=5 // pred_region
      %s227 = ssub.s32 %s12, 1
      %p228 = scmp.lt.s32.totalorder %s17, 1
      %s229 = scalar_select %p228, %s17, 1
      %s230 = smul.addr %s229, 8
      %s231 = smul.addr %s230, 8
      %s232 = scalar_lea.vmem %s0, %s231
      %p233 = pneg %p38
      %p234 = pneg %p35
      %p235 = scmp.lt.s32.totalorder %s17, 1
      %s236 = scalar_select %p235, %s17, 1
      %s237 = smul.addr %s236, 16
      %s238 = smul.addr %s237, 4
      %s239 = scalar_lea.vmem %s1, %s238
      %p240 = pneg %p64
      %p241 = pneg %p61
      %p242 = pneg %p85
      %p243 = pneg %p82
      %p244 = pneg %p106
      %p245 = pneg %p103
      %p246 = pneg %p127
      %p247 = pneg %p124
      %p248 = pneg %p148
      %p249 = pneg %p145
      %p250 = pneg %p174
      %p251 = pneg %p171
      %p252 = scmp.lt.s32.totalorder %s17, 1
      %s253 = scalar_select %p252, %s17, 1
      %s254 = smul.addr %s253, 8
      %s255 = smul.addr %s254, 8
      %s256 = scalar_lea.vmem %s6, %s255
      %p257 = scmp.lt.s32.totalorder %s17, 1
      %s258 = scalar_select %p257, %s17, 1
      %s259 = smul.addr %s258, 8
      %s260 = smul.addr %s259, 8
      %s261 = scalar_lea.vmem %s0, %s260
      %p262 = scmp.lt.s32.totalorder %s17, 1
      %s263 = scalar_select %p262, %s17, 1
      %s264 = smul.addr %s263, 16
      %s265 = smul.addr %s264, 4
      %s266 = scalar_lea.vmem %s1, %s265
      %p267 = scmp.lt.s32.totalorder %s17, 1
      %s268 = scalar_select %p267, %s17, 1
      %s269 = smul.addr %s268, 8
      %s270 = smul.addr %s269, 8
      %s271 = scalar_lea.vmem %s6, %s270
      %v273 = vld [vmem:[%s261] sm:$0xff]
      %v274 = vld [vmem:[%s261 + $0x8] sm:$0xff]
      %v275 = vld [vmem:[%s261 + $0x10] sm:$0xff]
      %v276 = vld [vmem:[%s261 + $0x18] sm:$0xff]
      %v277 = vld [vmem:[%s261 + $0x20] sm:$0xff]
      %v278 = vld [vmem:[%s261 + $0x28] sm:$0xff]
      %v279 = vld [vmem:[%s261 + $0x30] sm:$0xff]
      %v280 = vld [vmem:[%s261 + $0x38] sm:$0xff]
      %v281 = vld [vmem:[%s266] sm:$0xff]
      %v282 = vld [vmem:[%s266 + $0x8] sm:$0xff]
      %v283 = vld [vmem:[%s266 + $0x10] sm:$0xff]
      %v284 = vld [vmem:[%s266 + $0x18] sm:$0xff]
      %v285 = vld [vmem:[%s266 + $0x20] sm:$0xff]
      %v286 = vld [vmem:[%s266 + $0x28] sm:$0xff]
      %v287 = vld [vmem:[%s266 + $0x30] sm:$0xff]
      %v288 = vld [vmem:[%s266 + $0x38] sm:$0xff]
      %v289 = vld [vmem:[%s5] sm:$0xff]
      %v290 = vld [vmem:[%s5 + $0x8] sm:$0xff]
      %v291 = vld [vmem:[%s5 + $0x10] sm:$0xff]
      %v292 = vld [vmem:[%s5 + $0x18] sm:$0xff]
      %v293 = vlaneseq
      %v294 = vshrl.u32 %v293, 7
      %v295 = vadd.s32 %v294, 8
      %v296 = vadd.s32 %v294, 16
      %v297 = vadd.s32 %v294, 24
      %v298 = vlaneseq
      %v299 = vand.u32 %v298, 127
      %vm300 = vcmp.ge.s32.totalorder %v294, 0
      %vm301 = vcmp.ge.s32.totalorder %v295, 0
      %vm302 = vcmp.ge.s32.totalorder %v296, 0
      %vm303 = vcmp.ge.s32.totalorder %v297, 0
      %vm304 = vcmp.lt.s32.totalorder %v294, 4
      %vm305 = vcmp.lt.s32.totalorder %v295, 4
      %vm306 = vcmp.lt.s32.totalorder %v296, 4
      %vm307 = vcmp.lt.s32.totalorder %v297, 4
      %vm308 = vmand %vm300, %vm304
      %vm309 = vmand %vm301, %vm305
      %vm310 = vmand %vm302, %vm306
      %vm311 = vmand %vm303, %vm307
      %vm312 = vcmp.ge.s32.totalorder %v299, 0
      %vm313 = vmand %vm308, %vm312
      %vm314 = vmand %vm309, %vm312
      %vm315 = vmand %vm310, %vm312
      %vm316 = vmand %vm311, %vm312
      %vm317 = vcmp.lt.s32.totalorder %v299, 4
      %vm318 = vmand %vm313, %vm317
      %vm319 = vmand %vm314, %vm317
      %vm320 = vmand %vm315, %vm317
      %vm321 = vmand %vm316, %vm317
      %v322 = vsel %vm318, 1, 0
      %v323 = vsel %vm319, 1, 0
      %v324 = vsel %vm320, 1, 0
      %v325 = vsel %vm321, 1, 0
      %v326 = vcvt.s32.f32 %v322
      %v327 = vcvt.s32.f32 %v323
      %v328 = vcvt.s32.f32 %v324
      %v329 = vcvt.s32.f32 %v325
      %v330 = vadd.f32 %v326, 0.0
      %v331 = vadd.f32 %v327, 0.0
      %v332 = vadd.f32 %v328, 0.0
      %v333 = vadd.f32 %v329, 0.0
      %vm334 = vcmp.ge.s32.totalorder %v294, 4
      %vm335 = vcmp.ge.s32.totalorder %v295, 4
      %vm336 = vcmp.ge.s32.totalorder %v296, 4
      %vm337 = vcmp.ge.s32.totalorder %v297, 4
      %vm338 = vcmp.lt.s32.totalorder %v294, 8
      %vm339 = vcmp.lt.s32.totalorder %v295, 8
      %vm340 = vcmp.lt.s32.totalorder %v296, 8
      %vm341 = vcmp.lt.s32.totalorder %v297, 8
      %vm342 = vmand %vm334, %vm338
      %vm343 = vmand %vm335, %vm339
      %vm344 = vmand %vm336, %vm340
      %vm345 = vmand %vm337, %vm341
      %vm346 = vcmp.ge.s32.totalorder %v299, 4
      %vm347 = vmand %vm342, %vm346
      %vm348 = vmand %vm343, %vm346
      %vm349 = vmand %vm344, %vm346
      %vm350 = vmand %vm345, %vm346
      %vm351 = vcmp.lt.s32.totalorder %v299, 8
      %vm352 = vmand %vm347, %vm351
      %vm353 = vmand %vm348, %vm351
      %vm354 = vmand %vm349, %vm351
      %vm355 = vmand %vm350, %vm351
      %v356 = vsel %vm352, 1, 0
      %v357 = vsel %vm353, 1, 0
      %v358 = vsel %vm354, 1, 0
      %v359 = vsel %vm355, 1, 0
      %v360 = vcvt.s32.f32 %v356
      %v361 = vcvt.s32.f32 %v357
      %v362 = vcvt.s32.f32 %v358
      %v363 = vcvt.s32.f32 %v359
      %v364 = vadd.f32 %v330, %v360
      %v365 = vadd.f32 %v331, %v361
      %v366 = vadd.f32 %v332, %v362
      %v367 = vadd.f32 %v333, %v363
      %vm368 = vcmp.ge.s32.totalorder %v294, 8
      %vm369 = vcmp.ge.s32.totalorder %v295, 8
      %vm370 = vcmp.ge.s32.totalorder %v296, 8
      %vm371 = vcmp.ge.s32.totalorder %v297, 8
      %vm372 = vcmp.lt.s32.totalorder %v294, 12
      %vm373 = vcmp.lt.s32.totalorder %v295, 12
      %vm374 = vcmp.lt.s32.totalorder %v296, 12
      %vm375 = vcmp.lt.s32.totalorder %v297, 12
      %vm376 = vmand %vm368, %vm372
      %vm377 = vmand %vm369, %vm373
      %vm378 = vmand %vm370, %vm374
      %vm379 = vmand %vm371, %vm375
      %vm380 = vcmp.ge.s32.totalorder %v299, 8
      %vm381 = vmand %vm376, %vm380
      %vm382 = vmand %vm377, %vm380
      %vm383 = vmand %vm378, %vm380
      %vm384 = vmand %vm379, %vm380
      %vm385 = vcmp.lt.s32.totalorder %v299, 12
      %vm386 = vmand %vm381, %vm385
      %vm387 = vmand %vm382, %vm385
      %vm388 = vmand %vm383, %vm385
      %vm389 = vmand %vm384, %vm385
      %v390 = vsel %vm386, 1, 0
      %v391 = vsel %vm387, 1, 0
      %v392 = vsel %vm388, 1, 0
      %v393 = vsel %vm389, 1, 0
      %v394 = vcvt.s32.f32 %v390
      %v395 = vcvt.s32.f32 %v391
      %v396 = vcvt.s32.f32 %v392
      %v397 = vcvt.s32.f32 %v393
      %v398 = vadd.f32 %v364, %v394
      %v399 = vadd.f32 %v365, %v395
      %v400 = vadd.f32 %v366, %v396
      %v401 = vadd.f32 %v367, %v397
      %vm402 = vcmp.ge.s32.totalorder %v294, 12
      %vm403 = vcmp.ge.s32.totalorder %v295, 12
      %vm404 = vcmp.ge.s32.totalorder %v296, 12
      %vm405 = vcmp.ge.s32.totalorder %v297, 12
      %vm406 = vcmp.lt.s32.totalorder %v294, 16
      %vm407 = vcmp.lt.s32.totalorder %v295, 16
      %vm408 = vcmp.lt.s32.totalorder %v296, 16
      %vm409 = vcmp.lt.s32.totalorder %v297, 16
      %vm410 = vmand %vm402, %vm406
      %vm411 = vmand %vm403, %vm407
      %vm412 = vmand %vm404, %vm408
      %vm413 = vmand %vm405, %vm409
      %vm414 = vcmp.ge.s32.totalorder %v299, 12
      %vm415 = vmand %vm410, %vm414
      %vm416 = vmand %vm411, %vm414
      %vm417 = vmand %vm412, %vm414
      %vm418 = vmand %vm413, %vm414
      %vm419 = vcmp.lt.s32.totalorder %v299, 16
      %vm420 = vmand %vm415, %vm419
      %vm421 = vmand %vm416, %vm419
      %vm422 = vmand %vm417, %vm419
      %vm423 = vmand %vm418, %vm419
      %v424 = vsel %vm420, 1, 0
      %v425 = vsel %vm421, 1, 0
      %v426 = vsel %vm422, 1, 0
      %v427 = vsel %vm423, 1, 0
      %v428 = vcvt.s32.f32 %v424
      %v429 = vcvt.s32.f32 %v425
      %v430 = vcvt.s32.f32 %v426
      %v431 = vcvt.s32.f32 %v427
      %v432 = vadd.f32 %v398, %v428
      %v433 = vadd.f32 %v399, %v429
      %v434 = vadd.f32 %v400, %v430
      %v435 = vadd.f32 %v401, %v431
      %vm436 = vcmp.ge.s32.totalorder %v294, 16
      %vm437 = vcmp.ge.s32.totalorder %v295, 16
      %vm438 = vcmp.ge.s32.totalorder %v296, 16
      %vm439 = vcmp.ge.s32.totalorder %v297, 16
      %vm440 = vcmp.lt.s32.totalorder %v294, 20
      %vm441 = vcmp.lt.s32.totalorder %v295, 20
      %vm442 = vcmp.lt.s32.totalorder %v296, 20
      %vm443 = vcmp.lt.s32.totalorder %v297, 20
      %vm444 = vmand %vm436, %vm440
      %vm445 = vmand %vm437, %vm441
      %vm446 = vmand %vm438, %vm442
      %vm447 = vmand %vm439, %vm443
      %vm448 = vcmp.ge.s32.totalorder %v299, 16
      %vm449 = vmand %vm444, %vm448
      %vm450 = vmand %vm445, %vm448
      %vm451 = vmand %vm446, %vm448
      %vm452 = vmand %vm447, %vm448
      %vm453 = vcmp.lt.s32.totalorder %v299, 20
      %vm454 = vmand %vm449, %vm453
      %vm455 = vmand %vm450, %vm453
      %vm456 = vmand %vm451, %vm453
      %vm457 = vmand %vm452, %vm453
      %v458 = vsel %vm454, 1, 0
      %v459 = vsel %vm455, 1, 0
      %v460 = vsel %vm456, 1, 0
      %v461 = vsel %vm457, 1, 0
      %v462 = vcvt.s32.f32 %v458
      %v463 = vcvt.s32.f32 %v459
      %v464 = vcvt.s32.f32 %v460
      %v465 = vcvt.s32.f32 %v461
      %v466 = vadd.f32 %v432, %v462
      %v467 = vadd.f32 %v433, %v463
      %v468 = vadd.f32 %v434, %v464
      %v469 = vadd.f32 %v435, %v465
      %vm470 = vcmp.ge.s32.totalorder %v294, 20
      %vm471 = vcmp.ge.s32.totalorder %v295, 20
      %vm472 = vcmp.ge.s32.totalorder %v296, 20
      %vm473 = vcmp.ge.s32.totalorder %v297, 20
      %vm474 = vcmp.lt.s32.totalorder %v294, 24
      %vm475 = vcmp.lt.s32.totalorder %v295, 24
      %vm476 = vcmp.lt.s32.totalorder %v296, 24
      %vm477 = vcmp.lt.s32.totalorder %v297, 24
      %vm478 = vmand %vm470, %vm474
      %vm479 = vmand %vm471, %vm475
      %vm480 = vmand %vm472, %vm476
      %vm481 = vmand %vm473, %vm477
      %vm482 = vcmp.ge.s32.totalorder %v299, 20
      %vm483 = vmand %vm478, %vm482
      %vm484 = vmand %vm479, %vm482
      %vm485 = vmand %vm480, %vm482
      %vm486 = vmand %vm481, %vm482
      %vm487 = vcmp.lt.s32.totalorder %v299, 24
      %vm488 = vmand %vm483, %vm487
      %vm489 = vmand %vm484, %vm487
      %vm490 = vmand %vm485, %vm487
      %vm491 = vmand %vm486, %vm487
      %v492 = vsel %vm488, 1, 0
      %v493 = vsel %vm489, 1, 0
      %v494 = vsel %vm490, 1, 0
      %v495 = vsel %vm491, 1, 0
      %v496 = vcvt.s32.f32 %v492
      %v497 = vcvt.s32.f32 %v493
      %v498 = vcvt.s32.f32 %v494
      %v499 = vcvt.s32.f32 %v495
      %v500 = vadd.f32 %v466, %v496
      %v501 = vadd.f32 %v467, %v497
      %v502 = vadd.f32 %v468, %v498
      %v503 = vadd.f32 %v469, %v499
      %vm504 = vcmp.ge.s32.totalorder %v294, 24
      %vm505 = vcmp.ge.s32.totalorder %v295, 24
      %vm506 = vcmp.ge.s32.totalorder %v296, 24
      %vm507 = vcmp.ge.s32.totalorder %v297, 24
      %vm508 = vcmp.lt.s32.totalorder %v294, 28
      %vm509 = vcmp.lt.s32.totalorder %v295, 28
      %vm510 = vcmp.lt.s32.totalorder %v296, 28
      %vm511 = vcmp.lt.s32.totalorder %v297, 28
      %vm512 = vmand %vm504, %vm508
      %vm513 = vmand %vm505, %vm509
      %vm514 = vmand %vm506, %vm510
      %vm515 = vmand %vm507, %vm511
      %vm516 = vcmp.ge.s32.totalorder %v299, 24
      %vm517 = vmand %vm512, %vm516
      %vm518 = vmand %vm513, %vm516
      %vm519 = vmand %vm514, %vm516
      %vm520 = vmand %vm515, %vm516
      %vm521 = vcmp.lt.s32.totalorder %v299, 28
      %vm522 = vmand %vm517, %vm521
      %vm523 = vmand %vm518, %vm521
      %vm524 = vmand %vm519, %vm521
      %vm525 = vmand %vm520, %vm521
      %v526 = vsel %vm522, 1, 0
      %v527 = vsel %vm523, 1, 0
      %v528 = vsel %vm524, 1, 0
      %v529 = vsel %vm525, 1, 0
      %v530 = vcvt.s32.f32 %v526
      %v531 = vcvt.s32.f32 %v527
      %v532 = vcvt.s32.f32 %v528
      %v533 = vcvt.s32.f32 %v529
      %v534 = vadd.f32 %v500, %v530
      %v535 = vadd.f32 %v501, %v531
      %v536 = vadd.f32 %v502, %v532
      %v537 = vadd.f32 %v503, %v533
      %vm538 = vcmp.ge.s32.totalorder %v294, 28
      %vm539 = vcmp.ge.s32.totalorder %v295, 28
      %vm540 = vcmp.ge.s32.totalorder %v296, 28
      %vm541 = vcmp.ge.s32.totalorder %v297, 28
      %vm542 = vcmp.lt.s32.totalorder %v294, 32
      %vm543 = vcmp.lt.s32.totalorder %v295, 32
      %vm544 = vcmp.lt.s32.totalorder %v296, 32
      %vm545 = vcmp.lt.s32.totalorder %v297, 32
      %vm546 = vmand %vm538, %vm542
      %vm547 = vmand %vm539, %vm543
      %vm548 = vmand %vm540, %vm544
      %vm549 = vmand %vm541, %vm545
      %vm550 = vcmp.ge.s32.totalorder %v299, 28
      %vm551 = vmand %vm546, %vm550
      %vm552 = vmand %vm547, %vm550
      %vm553 = vmand %vm548, %vm550
      %vm554 = vmand %vm549, %vm550
      %vm555 = vcmp.lt.s32.totalorder %v299, 32
      %vm556 = vmand %vm551, %vm555
      %vm557 = vmand %vm552, %vm555
      %vm558 = vmand %vm553, %vm555
      %vm559 = vmand %vm554, %vm555
      %v560 = vsel %vm556, 1, 0
      %v561 = vsel %vm557, 1, 0
      %v562 = vsel %vm558, 1, 0
      %v563 = vsel %vm559, 1, 0
      %v564 = vcvt.s32.f32 %v560
      %v565 = vcvt.s32.f32 %v561
      %v566 = vcvt.s32.f32 %v562
      %v567 = vcvt.s32.f32 %v563
      %v568 = vadd.f32 %v534, %v564
      %v569 = vadd.f32 %v535, %v565
      %v570 = vadd.f32 %v536, %v566
      %v571 = vadd.f32 %v537, %v567
      %vm572 = vcmask 261120
      %v574 = vsel %vm572, %v568, 0
      %v577 = vsel %vm572, %v569, 0
      %v580 = vsel %vm572, %v570, 0
      %v583 = vsel %vm572, %v571, 0
      %585 = vmatprep.subr.mxu0 0.0
      %586 = vmatpush1.msra.mxu0 0.0
      %587 = vmatprep.subr.mxu0 0.0
      %588 = vmatpush1.msra.mxu0 0.0
      %589 = vmatprep.subr.mxu0 0.0
      %590 = vmatpush1.msra.mxu0 0.0
      %591 = vmatprep.subr.mxu0 0.0
      %592 = vmatpush1.msra.mxu0 0.0
      %593 = vmatprep.subr.mxu0 0.0
      %594 = vmatpush1.msra.mxu0 0.0
      %595 = vmatprep.subr.mxu0 0.0
      %596 = vmatpush1.msra.mxu0 0.0
      %597 = vmatprep.subr.mxu0 0.0
      %598 = vmatpush1.msra.mxu0 0.0
      %599 = vmatprep.subr.mxu0 0.0
      %600 = vmatpush1.msra.mxu0 0.0
      %601 = vmatprep.subr.mxu0 0.0
      %602 = vmatpush1.msra.mxu0 0.0
      %603 = vmatprep.subr.mxu0 0.0
      %604 = vmatpush1.msra.mxu0 0.0
      %605 = vmatprep.subr.mxu0 0.0
      %606 = vmatpush1.msra.mxu0 0.0
      %607 = vmatprep.subr.mxu0 0.0
      %608 = vmatpush1.msra.mxu0 0.0
      %609 = vmatprep.subr.mxu0 %v280
      %610 = vmatpush1.msra.mxu0 %v279
      %611 = vmatprep.subr.mxu0 %v278
      %612 = vmatpush1.msra.mxu0 %v277
      %613 = vmatprep.subr.mxu0 %v276
      %614 = vmatpush1.msra.mxu0 %v275
      %615 = vmatprep.subr.mxu0 %v274
      %616 = vmatpush1.msra.mxu0 %v273
      %617 = vmatprep.subr.mxu0 0.0
      %618 = vmatpush2.msra.mxu0 0.0
      %619 = vmatprep.subr.mxu0 0.0
      %620 = vmatpush2.msra.mxu0 0.0
      %621 = vmatprep.subr.mxu0 0.0
      %622 = vmatpush2.msra.mxu0 0.0
      %623 = vmatprep.subr.mxu0 0.0
      %624 = vmatpush2.msra.mxu0 0.0
      %625 = vmatprep.subr.mxu0 0.0
      %626 = vmatpush2.msra.mxu0 0.0
      %627 = vmatprep.subr.mxu0 0.0
      %628 = vmatpush2.msra.mxu0 0.0
      %629 = vmatprep.subr.mxu0 0.0
      %630 = vmatpush2.msra.mxu0 0.0
      %631 = vmatprep.subr.mxu0 0.0
      %632 = vmatpush2.msra.mxu0 0.0
      %633 = vmatprep.subr.mxu0 0.0
      %634 = vmatpush2.msra.mxu0 0.0
      %635 = vmatprep.subr.mxu0 0.0
      %636 = vmatpush2.msra.mxu0 0.0
      %637 = vmatprep.subr.mxu0 0.0
      %638 = vmatpush2.msra.mxu0 0.0
      %639 = vmatprep.subr.mxu0 0.0
      %640 = vmatpush2.msra.mxu0 0.0
      %641 = vmatprep.subr.mxu0 0.0
      %642 = vmatpush2.msra.mxu0 0.0
      %643 = vmatprep.subr.mxu0 0.0
      %644 = vmatpush2.msra.mxu0 0.0
      %645 = vmatprep.subr.mxu0 0.0
      %646 = vmatpush2.msra.mxu0 0.0
      %647 = vmatprep.subr.mxu0 0.0
      %648 = vmatpush2.msra.mxu0 0.0
      %649 = vmatprep.mubr.f32.mxu0 0.0
      %650 = vmatmul.mubr.f32.gmra.mxu0 %v574
      %v651 = vpop.f32.mrf.mxu0
      %v652 = vadd.f32 0.0, %v651
      %v653 = vpop.f32.mrf.mxu0
      %v654 = vadd.f32 0.0, %v653
      %655 = vmatprep.mubr.f32.mxu0 0.0
      %656 = vmatmul.mubr.f32.gmra.mxu0 %v577
      %v657 = vpop.f32.mrf.mxu0
      %v658 = vadd.f32 0.0, %v657
      %v659 = vpop.f32.mrf.mxu0
      %v660 = vadd.f32 0.0, %v659
      %661 = vmatprep.mubr.f32.mxu0 0.0
      %662 = vmatmul.mubr.f32.gmra.mxu0 %v580
      %v663 = vpop.f32.mrf.mxu0
      %v664 = vadd.f32 0.0, %v663
      %v665 = vpop.f32.mrf.mxu0
      %v666 = vadd.f32 0.0, %v665
      %667 = vmatprep.mubr.f32.mxu0 0.0
      %668 = vmatmul.mubr.f32.gmra.mxu0 %v583
      %v669 = vpop.f32.mrf.mxu0
      %v670 = vadd.f32 0.0, %v669
      %v671 = vpop.f32.mrf.mxu0
      %v672 = vadd.f32 0.0, %v671
      %673 = vdwg.mxu0
      %v674 = vadd.f32 %v652, %v654
      %675 = vadd.xlane.f32.xlu0 %v674
      %v676 = vpop.xlane.xlu0 %675
      %v677 = vadd.f32 %v658, %v660
      %678 = vadd.xlane.f32.xlu0 %v677
      %v679 = vpop.xlane.xlu0 %678
      %v680 = vadd.f32 %v664, %v666
      %681 = vadd.xlane.f32.xlu0 %v680
      %v682 = vpop.xlane.xlu0 %681
      %v683 = vadd.f32 %v670, %v672
      %684 = vadd.xlane.f32.xlu0 %v683
      %v685 = vpop.xlane.xlu0 %684
      %v686 = vmul.f32 %v676, 0.0009765625
      %v687 = vmul.f32 %v679, 0.0009765625
      %v688 = vmul.f32 %v682, 0.0009765625
      %v689 = vmul.f32 %v685, 0.0009765625
      %v690 = vsub.f32 %v273, %v686
      %v691 = vsub.f32 %v274, %v686
      %v692 = vsub.f32 %v275, %v687
      %v693 = vsub.f32 %v276, %v687
      %v694 = vsub.f32 %v277, %v688
      %v695 = vsub.f32 %v278, %v688
      %v696 = vsub.f32 %v279, %v689
      %v697 = vsub.f32 %v280, %v689
      %v698 = vmul.f32 %v690, %v690
      %v699 = vmul.f32 %v691, %v691
      %v700 = vmul.f32 %v692, %v692
      %v701 = vmul.f32 %v693, %v693
      %v702 = vmul.f32 %v694, %v694
      %v703 = vmul.f32 %v695, %v695
      %v704 = vmul.f32 %v696, %v696
      %v705 = vmul.f32 %v697, %v697
      %706 = vmatprep.subr.mxu0 0.0
      %707 = vmatpush1.msra.mxu0 0.0
      %708 = vmatprep.subr.mxu0 0.0
      %709 = vmatpush1.msra.mxu0 0.0
      %710 = vmatprep.subr.mxu0 0.0
      %711 = vmatpush1.msra.mxu0 0.0
      %712 = vmatprep.subr.mxu0 0.0
      %713 = vmatpush1.msra.mxu0 0.0
      %714 = vmatprep.subr.mxu0 0.0
      %715 = vmatpush1.msra.mxu0 0.0
      %716 = vmatprep.subr.mxu0 0.0
      %717 = vmatpush1.msra.mxu0 0.0
      %718 = vmatprep.subr.mxu0 0.0
      %719 = vmatpush1.msra.mxu0 0.0
      %720 = vmatprep.subr.mxu0 0.0
      %721 = vmatpush1.msra.mxu0 0.0
      %722 = vmatprep.subr.mxu0 0.0
      %723 = vmatpush1.msra.mxu0 0.0
      %724 = vmatprep.subr.mxu0 0.0
      %725 = vmatpush1.msra.mxu0 0.0
      %726 = vmatprep.subr.mxu0 0.0
      %727 = vmatpush1.msra.mxu0 0.0
      %728 = vmatprep.subr.mxu0 0.0
      %729 = vmatpush1.msra.mxu0 0.0
      %730 = vmatprep.subr.mxu0 %v705
      %731 = vmatpush1.msra.mxu0 %v704
      %732 = vmatprep.subr.mxu0 %v703
      %733 = vmatpush1.msra.mxu0 %v702
      %734 = vmatprep.subr.mxu0 %v701
      %735 = vmatpush1.msra.mxu0 %v700
      %736 = vmatprep.subr.mxu0 %v699
      %737 = vmatpush1.msra.mxu0 %v698
      %738 = vmatprep.subr.mxu0 0.0
      %739 = vmatpush2.msra.mxu0 0.0
      %740 = vmatprep.subr.mxu0 0.0
      %741 = vmatpush2.msra.mxu0 0.0
      %742 = vmatprep.subr.mxu0 0.0
      %743 = vmatpush2.msra.mxu0 0.0
      %744 = vmatprep.subr.mxu0 0.0
      %745 = vmatpush2.msra.mxu0 0.0
      %746 = vmatprep.subr.mxu0 0.0
      %747 = vmatpush2.msra.mxu0 0.0
      %748 = vmatprep.subr.mxu0 0.0
      %749 = vmatpush2.msra.mxu0 0.0
      %750 = vmatprep.subr.mxu0 0.0
      %751 = vmatpush2.msra.mxu0 0.0
      %752 = vmatprep.subr.mxu0 0.0
      %753 = vmatpush2.msra.mxu0 0.0
      %754 = vmatprep.subr.mxu0 0.0
      %755 = vmatpush2.msra.mxu0 0.0
      %756 = vmatprep.subr.mxu0 0.0
      %757 = vmatpush2.msra.mxu0 0.0
      %758 = vmatprep.subr.mxu0 0.0
      %759 = vmatpush2.msra.mxu0 0.0
      %760 = vmatprep.subr.mxu0 0.0
      %761 = vmatpush2.msra.mxu0 0.0
      %762 = vmatprep.subr.mxu0 0.0
      %763 = vmatpush2.msra.mxu0 0.0
      %764 = vmatprep.subr.mxu0 0.0
      %765 = vmatpush2.msra.mxu0 0.0
      %766 = vmatprep.subr.mxu0 0.0
      %767 = vmatpush2.msra.mxu0 0.0
      %768 = vmatprep.subr.mxu0 0.0
      %769 = vmatpush2.msra.mxu0 0.0
      %770 = vmatprep.mubr.f32.mxu0 0.0
      %771 = vmatmul.mubr.f32.gmra.mxu0 %v574
      %v772 = vpop.f32.mrf.mxu0
      %v773 = vadd.f32 0.0, %v772
      %v774 = vpop.f32.mrf.mxu0
      %v775 = vadd.f32 0.0, %v774
      %776 = vmatprep.mubr.f32.mxu0 0.0
      %777 = vmatmul.mubr.f32.gmra.mxu0 %v577
      %v778 = vpop.f32.mrf.mxu0
      %v779 = vadd.f32 0.0, %v778
      %v780 = vpop.f32.mrf.mxu0
      %v781 = vadd.f32 0.0, %v780
      %782 = vmatprep.mubr.f32.mxu0 0.0
      %783 = vmatmul.mubr.f32.gmra.mxu0 %v580
      %v784 = vpop.f32.mrf.mxu0
      %v785 = vadd.f32 0.0, %v784
      %v786 = vpop.f32.mrf.mxu0
      %v787 = vadd.f32 0.0, %v786
      %788 = vmatprep.mubr.f32.mxu0 0.0
      %789 = vmatmul.mubr.f32.gmra.mxu0 %v583
      %v790 = vpop.f32.mrf.mxu0
      %v791 = vadd.f32 0.0, %v790
      %v792 = vpop.f32.mrf.mxu0
      %v793 = vadd.f32 0.0, %v792
      %794 = vdwg.mxu0
      %v795 = vadd.f32 %v773, %v775
      %796 = vadd.xlane.f32.xlu0 %v795
      %v797 = vpop.xlane.xlu0 %796
      %v798 = vadd.f32 %v779, %v781
      %799 = vadd.xlane.f32.xlu0 %v798
      %v800 = vpop.xlane.xlu0 %799
      %v801 = vadd.f32 %v785, %v787
      %802 = vadd.xlane.f32.xlu0 %v801
      %v803 = vpop.xlane.xlu0 %802
      %v804 = vadd.f32 %v791, %v793
      %805 = vadd.xlane.f32.xlu0 %v804
      %v806 = vpop.xlane.xlu0 %805
      %v807 = vmul.f32 %v797, 0.0009765625
      %v808 = vmul.f32 %v800, 0.0009765625
      %v809 = vmul.f32 %v803, 0.0009765625
      %v810 = vmul.f32 %v806, 0.0009765625
      %v811 = vadd.f32 %v807, 1e-05
      %v812 = vadd.f32 %v808, 1e-05
      %v813 = vadd.f32 %v809, 1e-05
      %v814 = vadd.f32 %v810, 1e-05
      %v815 = vrsqrt.pop %v811
      %v816 = vrsqrt.pop %v812
      %v817 = vrsqrt.pop %v813
      %v818 = vrsqrt.pop %v814
      %v819 = vmul.f32 %v690, %v815
      %v820 = vmul.f32 %v691, %v815
      %v821 = vmul.f32 %v692, %v816
      %v822 = vmul.f32 %v693, %v816
      %v823 = vmul.f32 %v694, %v817
      %v824 = vmul.f32 %v695, %v817
      %v825 = vmul.f32 %v696, %v818
      %v826 = vmul.f32 %v697, %v818
      %828 = vset.pattern.permute.xlu0 3
      %829 = vperm.xlu0 %828, %v289
      %v830 = vpop.permute.xlu0 %829
      %833 = vset.pattern.permute.xlu0 3
      %834 = vperm.xlu0 %833, %v290
      %v835 = vpop.permute.xlu0 %834
      %838 = vset.pattern.permute.xlu0 3
      %839 = vperm.xlu0 %838, %v291
      %v840 = vpop.permute.xlu0 %839
      %843 = vset.pattern.permute.xlu0 3
      %844 = vperm.xlu0 %843, %v292
      %v845 = vpop.permute.xlu0 %844
      %v847 = vmul.f32 %v819, %v830
      %v848 = vmul.f32 %v820, %v830
      %v849 = vmul.f32 %v821, %v835
      %v850 = vmul.f32 %v822, %v835
      %v851 = vmul.f32 %v823, %v840
      %v852 = vmul.f32 %v824, %v840
      %v853 = vmul.f32 %v825, %v845
      %v854 = vmul.f32 %v826, %v845
      %855 = vset.pattern.permute.xlu0 4
      %856 = vperm.xlu0 %855, %v289
      %v857 = vpop.permute.xlu0 %856
      %859 = vset.pattern.permute.xlu0 4
      %860 = vperm.xlu0 %859, %v290
      %v861 = vpop.permute.xlu0 %860
      %863 = vset.pattern.permute.xlu0 4
      %864 = vperm.xlu0 %863, %v291
      %v865 = vpop.permute.xlu0 %864
      %867 = vset.pattern.permute.xlu0 4
      %868 = vperm.xlu0 %867, %v292
      %v869 = vpop.permute.xlu0 %868
      %v871 = vadd.f32 %v847, %v857
      %v872 = vadd.f32 %v848, %v857
      %v873 = vadd.f32 %v849, %v861
      %v874 = vadd.f32 %v850, %v861
      %v875 = vadd.f32 %v851, %v865
      %v876 = vadd.f32 %v852, %v865
      %v877 = vadd.f32 %v853, %v869
      %v878 = vadd.f32 %v854, %v869
      %v879 = vld [vmem:[%s2] sm:$0xf]
      %v880 = vld [vmem:[%s2 + $0x4] sm:$0xf]
      %v881 = vpack.c.bf16 %v873, %v871
      %v882 = vpack.c.bf16 %v874, %v872
      %v883 = vpack.c.bf16 %v877, %v875
      %v884 = vpack.c.bf16 %v878, %v876
      %885 = vset.pattern.permute.xlu0 0
      %886 = vperm.xlu0 %885, %v289
      %v887 = vpop.permute.xlu0 %886
      %889 = vset.pattern.permute.xlu0 0
      %890 = vperm.xlu0 %889, %v290
      %v891 = vpop.permute.xlu0 %890
      %v895 = vunpack.c.l.b16 %v879
      %v896 = vunpack.c.l.b16 %v880
      %v897 = vpack.c.b16 %v896, %v895
      %v899 = vsel %vm572, %v897, 0
      %901 = vmatprep.subr.bf16.mxu0 0
      %902 = vmatpush1.bf16.msra.mxu0 0
      %903 = vmatprep.subr.bf16.mxu0 0
      %904 = vmatpush1.bf16.msra.mxu0 0
      %905 = vmatprep.subr.bf16.mxu0 0
      %906 = vmatpush1.bf16.msra.mxu0 0
      %907 = vmatprep.subr.bf16.mxu0 0
      %908 = vmatpush1.bf16.msra.mxu0 0
      %909 = vmatprep.subr.bf16.mxu0 0
      %910 = vmatpush1.bf16.msra.mxu0 0
      %911 = vmatprep.subr.bf16.mxu0 0
      %912 = vmatpush1.bf16.msra.mxu0 0
      %913 = vmatprep.subr.bf16.mxu0 %v884
      %914 = vmatpush1.bf16.msra.mxu0 %v883
      %915 = vmatprep.subr.bf16.mxu0 %v882
      %916 = vmatpush1.bf16.msra.mxu0 %v881
      %917 = vmatprep.subr.bf16.mxu0 0
      %918 = vmatpush2.bf16.msra.mxu0 0
      %919 = vmatprep.subr.bf16.mxu0 0
      %920 = vmatpush2.bf16.msra.mxu0 0
      %921 = vmatprep.subr.bf16.mxu0 0
      %922 = vmatpush2.bf16.msra.mxu0 0
      %923 = vmatprep.subr.bf16.mxu0 0
      %924 = vmatpush2.bf16.msra.mxu0 0
      %925 = vmatprep.subr.bf16.mxu0 0
      %926 = vmatpush2.bf16.msra.mxu0 0
      %927 = vmatprep.subr.bf16.mxu0 0
      %928 = vmatpush2.bf16.msra.mxu0 0
      %929 = vmatprep.subr.bf16.mxu0 0
      %930 = vmatpush2.bf16.msra.mxu0 0
      %931 = vmatprep.subr.bf16.mxu0 0
      %932 = vmatpush2.bf16.msra.mxu0 0
      %933 = vmatprep.mubr.bf16.mxu0 0
      %934 = vmatmul.mubr.bf16.gmra.mxu0 %v899
      %v935 = vpop.f32.mrf.mxu0
      %v936 = vadd.f32 %v887, %v935
      %v937 = vpop.f32.mrf.mxu0
      %v938 = vadd.f32 %v887, %v937
      %v939 = vpop.f32.mrf.mxu0
      %v940 = vadd.f32 %v891, %v939
      %v941 = vpop.f32.mrf.mxu0
      %v942 = vadd.f32 %v891, %v941
      %943 = vdwg.mxu0
      %v944 = vld [vmem:[%s3] sm:$0xf]
      %v945 = vld [vmem:[%s3 + $0x4] sm:$0xf]
      %v946 = vld [vmem:[%s3 + $0x8] sm:$0xf]
      %v947 = vld [vmem:[%s3 + $0xc] sm:$0xf]
      %948 = vset.pattern.permute.xlu0 1
      %949 = vperm.xlu0 %948, %v289
      %v950 = vpop.permute.xlu0 %949
      %952 = vset.pattern.permute.xlu0 1
      %953 = vperm.xlu0 %952, %v290
      %v954 = vpop.permute.xlu0 %953
      %956 = vset.pattern.permute.xlu0 1
      %957 = vperm.xlu0 %956, %v291
      %v958 = vpop.permute.xlu0 %957
      %960 = vset.pattern.permute.xlu0 1
      %961 = vperm.xlu0 %960, %v292
      %v962 = vpop.permute.xlu0 %961
      %v968 = vunpack.c.l.b16 %v944
      %v969 = vunpack.c.l.b16 %v945
      %v970 = vunpack.c.l.b16 %v946
      %v971 = vunpack.c.l.b16 %v947
      %v972 = vpack.c.b16 %v969, %v968
      %v973 = vpack.c.b16 %v971, %v970
      %v982 = vunpack.c.l.b16 %v281
      %v983 = vunpack.c.h.b16 %v281
      %v984 = vunpack.c.l.b16 %v282
      %v985 = vunpack.c.h.b16 %v282
      %v986 = vunpack.c.l.b16 %v283
      %v987 = vunpack.c.h.b16 %v283
      %v988 = vunpack.c.l.b16 %v284
      %v989 = vunpack.c.h.b16 %v284
      %v990 = vunpack.c.l.b16 %v285
      %v991 = vunpack.c.h.b16 %v285
      %v992 = vunpack.c.l.b16 %v286
      %v993 = vunpack.c.h.b16 %v286
      %v994 = vunpack.c.l.b16 %v287
      %v995 = vunpack.c.h.b16 %v287
      %v996 = vunpack.c.l.b16 %v288
      %v997 = vunpack.c.h.b16 %v288
      %v998 = vpack.c.b16 %v984, %v982
      %v999 = vpack.c.b16 %v985, %v983
      %v1000 = vpack.c.b16 %v988, %v986
      %v1001 = vpack.c.b16 %v989, %v987
      %v1002 = vpack.c.b16 %v992, %v990
      %v1003 = vpack.c.b16 %v993, %v991
      %v1004 = vpack.c.b16 %v996, %v994
      %v1005 = vpack.c.b16 %v997, %v995
      %vm1014 = vcmask 523264
      %v1016 = vsel %vm1014, %v972, 0
      %v1019 = vsel %vm1014, %v973, 0
      %1021 = vmatprep.subr.bf16.mxu0 0
      %1022 = vmatpush1.bf16.msra.mxu0 0
      %1023 = vmatprep.subr.bf16.mxu0 0
      %1024 = vmatpush1.bf16.msra.mxu0 0
      %1025 = vmatprep.subr.bf16.mxu0 0
      %1026 = vmatpush1.bf16.msra.mxu0 0
      %1027 = vmatprep.subr.bf16.mxu0 0
      %1028 = vmatpush1.bf16.msra.mxu0 0
      %1029 = vmatprep.subr.bf16.mxu0 %v1005
      %1030 = vmatpush1.bf16.msra.mxu0 %v1004
      %1031 = vmatprep.subr.bf16.mxu0 %v1003
      %1032 = vmatpush1.bf16.msra.mxu0 %v1002
      %1033 = vmatprep.subr.bf16.mxu0 %v1001
      %1034 = vmatpush1.bf16.msra.mxu0 %v1000
      %1035 = vmatprep.subr.bf16.mxu0 %v999
      %1036 = vmatpush1.bf16.msra.mxu0 %v998
      %1037 = vmatprep.subr.bf16.mxu0 0
      %1038 = vmatpush2.bf16.msra.mxu0 0
      %1039 = vmatprep.subr.bf16.mxu0 0
      %1040 = vmatpush2.bf16.msra.mxu0 0
      %1041 = vmatprep.subr.bf16.mxu0 0
      %1042 = vmatpush2.bf16.msra.mxu0 0
      %1043 = vmatprep.subr.bf16.mxu0 0
      %1044 = vmatpush2.bf16.msra.mxu0 0
      %1045 = vmatprep.subr.bf16.mxu0 0
      %1046 = vmatpush2.bf16.msra.mxu0 0
      %1047 = vmatprep.subr.bf16.mxu0 0
      %1048 = vmatpush2.bf16.msra.mxu0 0
      %1049 = vmatprep.subr.bf16.mxu0 0
      %1050 = vmatpush2.bf16.msra.mxu0 0
      %1051 = vmatprep.subr.bf16.mxu0 0
      %1052 = vmatpush2.bf16.msra.mxu0 0
      %1053 = vmatprep.mubr.bf16.mxu0 0
      %1054 = vmatmul.mubr.bf16.gmra.mxu0 %v1016
      %v1055 = vpop.f32.mrf.mxu0
      %v1056 = vadd.f32 %v950, %v1055
      %v1057 = vpop.f32.mrf.mxu0
      %v1058 = vadd.f32 %v950, %v1057
      %v1059 = vpop.f32.mrf.mxu0
      %v1060 = vadd.f32 %v954, %v1059
      %v1061 = vpop.f32.mrf.mxu0
      %v1062 = vadd.f32 %v954, %v1061
      %1063 = vmatprep.mubr.bf16.mxu0 0
      %1064 = vmatmul.mubr.bf16.gmra.mxu0 %v1019
      %v1065 = vpop.f32.mrf.mxu0
      %v1066 = vadd.f32 %v958, %v1065
      %v1067 = vpop.f32.mrf.mxu0
      %v1068 = vadd.f32 %v958, %v1067
      %v1069 = vpop.f32.mrf.mxu0
      %v1070 = vadd.f32 %v962, %v1069
      %v1071 = vpop.f32.mrf.mxu0
      %v1072 = vadd.f32 %v962, %v1071
      %1073 = vdwg.mxu0
      %v1074 = vpack.c.bf16 %v940, %v936
      %v1075 = vpack.c.bf16 %v942, %v938
      %v1076 = vpack.c.bf16 %v1060, %v1056
      %v1077 = vpack.c.bf16 %v1062, %v1058
      %1078 = vxpose.xlu0.c.b16.start [1/8] %v1074, 128
      %1079 = vxpose.xlu0.c.b16.cont [2/8] 0, 128
      %1080 = vxpose.xlu0.c.b16.cont [3/8] 0, 128
      %1081 = vxpose.xlu0.c.b16.cont [4/8] 0, 128
      %1082 = vxpose.xlu0.c.b16.cont [5/8] 0, 128
      %1083 = vxpose.xlu0.c.b16.cont [6/8] 0, 128
      %1084 = vxpose.xlu0.c.b16.cont [7/8] 0, 128
      %1085 = vxpose.xlu0.c.b16.end [8/8] 0, 128
      %v1086 = vpop.trf.xlu0
      %v1087 = vpop.trf.xlu0
      %v1088 = vpop.trf.xlu0
      %v1089 = vpop.trf.xlu0
      %v1090 = vpop.trf.xlu0
      %v1091 = vpop.trf.xlu0
      %v1092 = vpop.trf.xlu0
      %v1093 = vpop.trf.xlu0
      %1094 = vxpose.xlu0.c.b16.start [1/8] %v1075, 128
      %1095 = vxpose.xlu0.c.b16.cont [2/8] 0, 128
      %1096 = vxpose.xlu0.c.b16.cont [3/8] 0, 128
      %1097 = vxpose.xlu0.c.b16.cont [4/8] 0, 128
      %1098 = vxpose.xlu0.c.b16.cont [5/8] 0, 128
      %1099 = vxpose.xlu0.c.b16.cont [6/8] 0, 128
      %1100 = vxpose.xlu0.c.b16.cont [7/8] 0, 128
      %1101 = vxpose.xlu0.c.b16.end [8/8] 0, 128
      %v1102 = vpop.trf.xlu0
      %v1103 = vpop.trf.xlu0
      %v1104 = vpop.trf.xlu0
      %v1105 = vpop.trf.xlu0
      %v1106 = vpop.trf.xlu0
      %v1107 = vpop.trf.xlu0
      %v1108 = vpop.trf.xlu0
      %v1109 = vpop.trf.xlu0
      %vm1110 = vcmask 130048
      %v1112 = vsel %vm1110, %v1086, 0
      %v1115 = vsel %vm1110, %v1087, 0
      %v1118 = vsel %vm1110, %v1088, 0
      %v1121 = vsel %vm1110, %v1089, 0
      %v1124 = vsel %vm1110, %v1090, 0
      %v1127 = vsel %vm1110, %v1091, 0
      %v1130 = vsel %vm1110, %v1092, 0
      %v1133 = vsel %vm1110, %v1093, 0
      %v1136 = vsel %vm1110, %v1102, 0
      %v1139 = vsel %vm1110, %v1103, 0
      %v1142 = vsel %vm1110, %v1104, 0
      %v1145 = vsel %vm1110, %v1105, 0
      %v1148 = vsel %vm1110, %v1106, 0
      %v1151 = vsel %vm1110, %v1107, 0
      %v1154 = vsel %vm1110, %v1108, 0
      %v1157 = vsel %vm1110, %v1109, 0
      %1159 = vmatprep.subr.bf16.mxu0 0
      %1160 = vmatpush1.bf16.msra.mxu0 0
      %1161 = vmatprep.subr.bf16.mxu0 0
      %1162 = vmatpush1.bf16.msra.mxu0 0
      %1163 = vmatprep.subr.bf16.mxu0 0
      %1164 = vmatpush1.bf16.msra.mxu0 0
      %1165 = vmatprep.subr.bf16.mxu0 0
      %1166 = vmatpush1.bf16.msra.mxu0 0
      %1167 = vmatprep.subr.bf16.mxu0 0
      %1168 = vmatpush1.bf16.msra.mxu0 0
      %1169 = vmatprep.subr.bf16.mxu0 0
      %1170 = vmatpush1.bf16.msra.mxu0 0
      %1171 = vmatprep.subr.bf16.mxu0 0
      %1172 = vmatpush1.bf16.msra.mxu0 0
      %1173 = vmatprep.subr.bf16.mxu0 %v1077
      %1174 = vmatpush1.bf16.msra.mxu0 %v1076
      %1175 = vmatprep.subr.bf16.mxu0 0
      %1176 = vmatpush2.bf16.msra.mxu0 0
      %1177 = vmatprep.subr.bf16.mxu0 0
      %1178 = vmatpush2.bf16.msra.mxu0 0
      %1179 = vmatprep.subr.bf16.mxu0 0
      %1180 = vmatpush2.bf16.msra.mxu0 0
      %1181 = vmatprep.subr.bf16.mxu0 0
      %1182 = vmatpush2.bf16.msra.mxu0 0
      %1183 = vmatprep.subr.bf16.mxu0 0
      %1184 = vmatpush2.bf16.msra.mxu0 0
      %1185 = vmatprep.subr.bf16.mxu0 0
      %1186 = vmatpush2.bf16.msra.mxu0 0
      %1187 = vmatprep.subr.bf16.mxu0 0
      %1188 = vmatpush2.bf16.msra.mxu0 0
      %1189 = vmatprep.subr.bf16.mxu0 0
      %1190 = vmatpush2.bf16.msra.mxu0 0
      %1191 = vmatprep.mubr.bf16.mxu0 0
      %1192 = vmatmul.mubr.bf16.gmra.mxu0 %v1112
      %v1193 = vpop.f32.mrf.mxu0
      %v1194 = vadd.f32 0.0, %v1193
      %v1195 = vpop.f32.mrf.mxu0
      %v1196 = vadd.f32 0.0, %v1195
      %v1197 = vpop.f32.mrf.mxu0
      %v1198 = vadd.f32 0.0, %v1197
      %v1199 = vpop.f32.mrf.mxu0
      %v1200 = vadd.f32 0.0, %v1199
      %1201 = vmatprep.mubr.bf16.mxu0 0
      %1202 = vmatmul.mubr.bf16.gmra.mxu0 %v1115
      %v1203 = vpop.f32.mrf.mxu0
      %v1204 = vadd.f32 0.0, %v1203
      %v1205 = vpop.f32.mrf.mxu0
      %v1206 = vadd.f32 0.0, %v1205
      %v1207 = vpop.f32.mrf.mxu0
      %v1208 = vadd.f32 0.0, %v1207
      %v1209 = vpop.f32.mrf.mxu0
      %v1210 = vadd.f32 0.0, %v1209
      %1211 = vmatprep.mubr.bf16.mxu0 0
      %1212 = vmatmul.mubr.bf16.gmra.mxu0 %v1118
      %v1213 = vpop.f32.mrf.mxu0
      %v1214 = vadd.f32 0.0, %v1213
      %v1215 = vpop.f32.mrf.mxu0
      %v1216 = vadd.f32 0.0, %v1215
      %v1217 = vpop.f32.mrf.mxu0
      %v1218 = vadd.f32 0.0, %v1217
      %v1219 = vpop.f32.mrf.mxu0
      %v1220 = vadd.f32 0.0, %v1219
      %1221 = vmatprep.mubr.bf16.mxu0 0
      %1222 = vmatmul.mubr.bf16.gmra.mxu0 %v1121
      %v1223 = vpop.f32.mrf.mxu0
      %v1224 = vadd.f32 0.0, %v1223
      %v1225 = vpop.f32.mrf.mxu0
      %v1226 = vadd.f32 0.0, %v1225
      %v1227 = vpop.f32.mrf.mxu0
      %v1228 = vadd.f32 0.0, %v1227
      %v1229 = vpop.f32.mrf.mxu0
      %v1230 = vadd.f32 0.0, %v1229
      %1231 = vmatprep.mubr.bf16.mxu0 0
      %1232 = vmatmul.mubr.bf16.gmra.mxu0 %v1124
      %v1233 = vpop.f32.mrf.mxu0
      %v1234 = vadd.f32 0.0, %v1233
      %v1235 = vpop.f32.mrf.mxu0
      %v1236 = vadd.f32 0.0, %v1235
      %v1237 = vpop.f32.mrf.mxu0
      %v1238 = vadd.f32 0.0, %v1237
      %v1239 = vpop.f32.mrf.mxu0
      %v1240 = vadd.f32 0.0, %v1239
      %1241 = vmatprep.mubr.bf16.mxu0 0
      %1242 = vmatmul.mubr.bf16.gmra.mxu0 %v1127
      %v1243 = vpop.f32.mrf.mxu0
      %v1244 = vadd.f32 0.0, %v1243
      %v1245 = vpop.f32.mrf.mxu0
      %v1246 = vadd.f32 0.0, %v1245
      %v1247 = vpop.f32.mrf.mxu0
      %v1248 = vadd.f32 0.0, %v1247
      %v1249 = vpop.f32.mrf.mxu0
      %v1250 = vadd.f32 0.0, %v1249
      %1251 = vmatprep.mubr.bf16.mxu0 0
      %1252 = vmatmul.mubr.bf16.gmra.mxu0 %v1130
      %v1253 = vpop.f32.mrf.mxu0
      %v1254 = vadd.f32 0.0, %v1253
      %v1255 = vpop.f32.mrf.mxu0
      %v1256 = vadd.f32 0.0, %v1255
      %v1257 = vpop.f32.mrf.mxu0
      %v1258 = vadd.f32 0.0, %v1257
      %v1259 = vpop.f32.mrf.mxu0
      %v1260 = vadd.f32 0.0, %v1259
      %1261 = vmatprep.mubr.bf16.mxu0 0
      %1262 = vmatmul.mubr.bf16.gmra.mxu0 %v1133
      %v1263 = vpop.f32.mrf.mxu0
      %v1264 = vadd.f32 0.0, %v1263
      %v1265 = vpop.f32.mrf.mxu0
      %v1266 = vadd.f32 0.0, %v1265
      %v1267 = vpop.f32.mrf.mxu0
      %v1268 = vadd.f32 0.0, %v1267
      %v1269 = vpop.f32.mrf.mxu0
      %v1270 = vadd.f32 0.0, %v1269
      %1271 = vmatprep.mubr.bf16.mxu0 0
      %1272 = vmatmul.mubr.bf16.gmra.mxu0 %v1136
      %v1273 = vpop.f32.mrf.mxu0
      %v1274 = vadd.f32 0.0, %v1273
      %v1275 = vpop.f32.mrf.mxu0
      %v1276 = vadd.f32 0.0, %v1275
      %v1277 = vpop.f32.mrf.mxu0
      %v1278 = vadd.f32 0.0, %v1277
      %v1279 = vpop.f32.mrf.mxu0
      %v1280 = vadd.f32 0.0, %v1279
      %1281 = vmatprep.mubr.bf16.mxu0 0
      %1282 = vmatmul.mubr.bf16.gmra.mxu0 %v1139
      %v1283 = vpop.f32.mrf.mxu0
      %v1284 = vadd.f32 0.0, %v1283
      %v1285 = vpop.f32.mrf.mxu0
      %v1286 = vadd.f32 0.0, %v1285
      %v1287 = vpop.f32.mrf.mxu0
      %v1288 = vadd.f32 0.0, %v1287
      %v1289 = vpop.f32.mrf.mxu0
      %v1290 = vadd.f32 0.0, %v1289
      %1291 = vmatprep.mubr.bf16.mxu0 0
      %1292 = vmatmul.mubr.bf16.gmra.mxu0 %v1142
      %v1293 = vpop.f32.mrf.mxu0
      %v1294 = vadd.f32 0.0, %v1293
      %v1295 = vpop.f32.mrf.mxu0
      %v1296 = vadd.f32 0.0, %v1295
      %v1297 = vpop.f32.mrf.mxu0
      %v1298 = vadd.f32 0.0, %v1297
      %v1299 = vpop.f32.mrf.mxu0
      %v1300 = vadd.f32 0.0, %v1299
      %1301 = vmatprep.mubr.bf16.mxu0 0
      %1302 = vmatmul.mubr.bf16.gmra.mxu0 %v1145
      %v1303 = vpop.f32.mrf.mxu0
      %v1304 = vadd.f32 0.0, %v1303
      %v1305 = vpop.f32.mrf.mxu0
      %v1306 = vadd.f32 0.0, %v1305
      %v1307 = vpop.f32.mrf.mxu0
      %v1308 = vadd.f32 0.0, %v1307
      %v1309 = vpop.f32.mrf.mxu0
      %v1310 = vadd.f32 0.0, %v1309
      %1311 = vmatprep.mubr.bf16.mxu0 0
      %1312 = vmatmul.mubr.bf16.gmra.mxu0 %v1148
      %v1313 = vpop.f32.mrf.mxu0
      %v1314 = vadd.f32 0.0, %v1313
      %v1315 = vpop.f32.mrf.mxu0
      %v1316 = vadd.f32 0.0, %v1315
      %v1317 = vpop.f32.mrf.mxu0
      %v1318 = vadd.f32 0.0, %v1317
      %v1319 = vpop.f32.mrf.mxu0
      %v1320 = vadd.f32 0.0, %v1319
      %1321 = vmatprep.mubr.bf16.mxu0 0
      %1322 = vmatmul.mubr.bf16.gmra.mxu0 %v1151
      %v1323 = vpop.f32.mrf.mxu0
      %v1324 = vadd.f32 0.0, %v1323
      %v1325 = vpop.f32.mrf.mxu0
      %v1326 = vadd.f32 0.0, %v1325
      %v1327 = vpop.f32.mrf.mxu0
      %v1328 = vadd.f32 0.0, %v1327
      %v1329 = vpop.f32.mrf.mxu0
      %v1330 = vadd.f32 0.0, %v1329
      %1331 = vmatprep.mubr.bf16.mxu0 0
      %1332 = vmatmul.mubr.bf16.gmra.mxu0 %v1154
      %v1333 = vpop.f32.mrf.mxu0
      %v1334 = vadd.f32 0.0, %v1333
      %v1335 = vpop.f32.mrf.mxu0
      %v1336 = vadd.f32 0.0, %v1335
      %v1337 = vpop.f32.mrf.mxu0
      %v1338 = vadd.f32 0.0, %v1337
      %v1339 = vpop.f32.mrf.mxu0
      %v1340 = vadd.f32 0.0, %v1339
      %1341 = vmatprep.mubr.bf16.mxu0 0
      %1342 = vmatmul.mubr.bf16.gmra.mxu0 %v1157
      %v1343 = vpop.f32.mrf.mxu0
      %v1344 = vadd.f32 0.0, %v1343
      %v1345 = vpop.f32.mrf.mxu0
      %v1346 = vadd.f32 0.0, %v1345
      %v1347 = vpop.f32.mrf.mxu0
      %v1348 = vadd.f32 0.0, %v1347
      %v1349 = vpop.f32.mrf.mxu0
      %v1350 = vadd.f32 0.0, %v1349
      %1351 = vdwg.mxu0
      %v1352 = vmax.f32 %v1194, %v1196
      %1353 = vmax.xlane.f32.xlu0 %v1352
      %v1354 = vpop.xlane.xlu0 %1353
      %v1355 = vmax.f32 %v1198, %v1200
      %1356 = vmax.xlane.f32.xlu0 %v1355
      %v1357 = vpop.xlane.xlu0 %1356
      %v1358 = vmax.f32 %v1204, %v1206
      %1359 = vmax.xlane.f32.xlu0 %v1358
      %v1360 = vpop.xlane.xlu0 %1359
      %v1361 = vmax.f32 %v1208, %v1210
      %1362 = vmax.xlane.f32.xlu0 %v1361
      %v1363 = vpop.xlane.xlu0 %1362
      %v1364 = vmax.f32 %v1214, %v1216
      %1365 = vmax.xlane.f32.xlu0 %v1364
      %v1366 = vpop.xlane.xlu0 %1365
      %v1367 = vmax.f32 %v1218, %v1220
      %1368 = vmax.xlane.f32.xlu0 %v1367
      %v1369 = vpop.xlane.xlu0 %1368
      %v1370 = vmax.f32 %v1224, %v1226
      %1371 = vmax.xlane.f32.xlu0 %v1370
      %v1372 = vpop.xlane.xlu0 %1371
      %v1373 = vmax.f32 %v1228, %v1230
      %1374 = vmax.xlane.f32.xlu0 %v1373
      %v1375 = vpop.xlane.xlu0 %1374
      %v1376 = vmax.f32 %v1234, %v1236
      %1377 = vmax.xlane.f32.xlu0 %v1376
      %v1378 = vpop.xlane.xlu0 %1377
      %v1379 = vmax.f32 %v1238, %v1240
      %1380 = vmax.xlane.f32.xlu0 %v1379
      %v1381 = vpop.xlane.xlu0 %1380
      %v1382 = vmax.f32 %v1244, %v1246
      %1383 = vmax.xlane.f32.xlu0 %v1382
      %v1384 = vpop.xlane.xlu0 %1383
      %v1385 = vmax.f32 %v1248, %v1250
      %1386 = vmax.xlane.f32.xlu0 %v1385
      %v1387 = vpop.xlane.xlu0 %1386
      %v1388 = vmax.f32 %v1254, %v1256
      %1389 = vmax.xlane.f32.xlu0 %v1388
      %v1390 = vpop.xlane.xlu0 %1389
      %v1391 = vmax.f32 %v1258, %v1260
      %1392 = vmax.xlane.f32.xlu0 %v1391
      %v1393 = vpop.xlane.xlu0 %1392
      %v1394 = vmax.f32 %v1264, %v1266
      %1395 = vmax.xlane.f32.xlu0 %v1394
      %v1396 = vpop.xlane.xlu0 %1395
      %v1397 = vmax.f32 %v1268, %v1270
      %1398 = vmax.xlane.f32.xlu0 %v1397
      %v1399 = vpop.xlane.xlu0 %1398
      %v1400 = vmax.f32 %v1274, %v1276
      %1401 = vmax.xlane.f32.xlu0 %v1400
      %v1402 = vpop.xlane.xlu0 %1401
      %v1403 = vmax.f32 %v1278, %v1280
      %1404 = vmax.xlane.f32.xlu0 %v1403
      %v1405 = vpop.xlane.xlu0 %1404
      %v1406 = vmax.f32 %v1284, %v1286
      %1407 = vmax.xlane.f32.xlu0 %v1406
      %v1408 = vpop.xlane.xlu0 %1407
      %v1409 = vmax.f32 %v1288, %v1290
      %1410 = vmax.xlane.f32.xlu0 %v1409
      %v1411 = vpop.xlane.xlu0 %1410
      %v1412 = vmax.f32 %v1294, %v1296
      %1413 = vmax.xlane.f32.xlu0 %v1412
      %v1414 = vpop.xlane.xlu0 %1413
      %v1415 = vmax.f32 %v1298, %v1300
      %1416 = vmax.xlane.f32.xlu0 %v1415
      %v1417 = vpop.xlane.xlu0 %1416
      %v1418 = vmax.f32 %v1304, %v1306
      %1419 = vmax.xlane.f32.xlu0 %v1418
      %v1420 = vpop.xlane.xlu0 %1419
      %v1421 = vmax.f32 %v1308, %v1310
      %1422 = vmax.xlane.f32.xlu0 %v1421
      %v1423 = vpop.xlane.xlu0 %1422
      %v1424 = vmax.f32 %v1314, %v1316
      %1425 = vmax.xlane.f32.xlu0 %v1424
      %v1426 = vpop.xlane.xlu0 %1425
      %v1427 = vmax.f32 %v1318, %v1320
      %1428 = vmax.xlane.f32.xlu0 %v1427
      %v1429 = vpop.xlane.xlu0 %1428
      %v1430 = vmax.f32 %v1324, %v1326
      %1431 = vmax.xlane.f32.xlu0 %v1430
      %v1432 = vpop.xlane.xlu0 %1431
      %v1433 = vmax.f32 %v1328, %v1330
      %1434 = vmax.xlane.f32.xlu0 %v1433
      %v1435 = vpop.xlane.xlu0 %1434
      %v1436 = vmax.f32 %v1334, %v1336
      %1437 = vmax.xlane.f32.xlu0 %v1436
      %v1438 = vpop.xlane.xlu0 %1437
      %v1439 = vmax.f32 %v1338, %v1340
      %1440 = vmax.xlane.f32.xlu0 %v1439
      %v1441 = vpop.xlane.xlu0 %1440
      %v1442 = vmax.f32 %v1344, %v1346
      %1443 = vmax.xlane.f32.xlu0 %v1442
      %v1444 = vpop.xlane.xlu0 %1443
      %v1445 = vmax.f32 %v1348, %v1350
      %1446 = vmax.xlane.f32.xlu0 %v1445
      %v1447 = vpop.xlane.xlu0 %1446
      %v1448 = vsub.f32 %v1194, %v1354
      %v1449 = vsub.f32 %v1196, %v1354
      %v1450 = vsub.f32 %v1198, %v1357
      %v1451 = vsub.f32 %v1200, %v1357
      %v1452 = vsub.f32 %v1204, %v1360
      %v1453 = vsub.f32 %v1206, %v1360
      %v1454 = vsub.f32 %v1208, %v1363
      %v1455 = vsub.f32 %v1210, %v1363
      %v1456 = vsub.f32 %v1214, %v1366
      %v1457 = vsub.f32 %v1216, %v1366
      %v1458 = vsub.f32 %v1218, %v1369
      %v1459 = vsub.f32 %v1220, %v1369
      %v1460 = vsub.f32 %v1224, %v1372
      %v1461 = vsub.f32 %v1226, %v1372
      %v1462 = vsub.f32 %v1228, %v1375
      %v1463 = vsub.f32 %v1230, %v1375
      %v1464 = vsub.f32 %v1234, %v1378
      %v1465 = vsub.f32 %v1236, %v1378
      %v1466 = vsub.f32 %v1238, %v1381
      %v1467 = vsub.f32 %v1240, %v1381
      %v1468 = vsub.f32 %v1244, %v1384
      %v1469 = vsub.f32 %v1246, %v1384
      %v1470 = vsub.f32 %v1248, %v1387
      %v1471 = vsub.f32 %v1250, %v1387
      %v1472 = vsub.f32 %v1254, %v1390
      %v1473 = vsub.f32 %v1256, %v1390
      %v1474 = vsub.f32 %v1258, %v1393
      %v1475 = vsub.f32 %v1260, %v1393
      %v1476 = vsub.f32 %v1264, %v1396
      %v1477 = vsub.f32 %v1266, %v1396
      %v1478 = vsub.f32 %v1268, %v1399
      %v1479 = vsub.f32 %v1270, %v1399
      %v1480 = vsub.f32 %v1274, %v1402
      %v1481 = vsub.f32 %v1276, %v1402
      %v1482 = vsub.f32 %v1278, %v1405
      %v1483 = vsub.f32 %v1280, %v1405
      %v1484 = vsub.f32 %v1284, %v1408
      %v1485 = vsub.f32 %v1286, %v1408
      %v1486 = vsub.f32 %v1288, %v1411
      %v1487 = vsub.f32 %v1290, %v1411
      %v1488 = vsub.f32 %v1294, %v1414
      %v1489 = vsub.f32 %v1296, %v1414
      %v1490 = vsub.f32 %v1298, %v1417
      %v1491 = vsub.f32 %v1300, %v1417
      %v1492 = vsub.f32 %v1304, %v1420
      %v1493 = vsub.f32 %v1306, %v1420
      %v1494 = vsub.f32 %v1308, %v1423
      %v1495 = vsub.f32 %v1310, %v1423
      %v1496 = vsub.f32 %v1314, %v1426
      %v1497 = vsub.f32 %v1316, %v1426
      %v1498 = vsub.f32 %v1318, %v1429
      %v1499 = vsub.f32 %v1320, %v1429
      %v1500 = vsub.f32 %v1324, %v1432
      %v1501 = vsub.f32 %v1326, %v1432
      %v1502 = vsub.f32 %v1328, %v1435
      %v1503 = vsub.f32 %v1330, %v1435
      %v1504 = vsub.f32 %v1334, %v1438
      %v1505 = vsub.f32 %v1336, %v1438
      %v1506 = vsub.f32 %v1338, %v1441
      %v1507 = vsub.f32 %v1340, %v1441
      %v1508 = vsub.f32 %v1344, %v1444
      %v1509 = vsub.f32 %v1346, %v1444
      %v1510 = vsub.f32 %v1348, %v1447
      %v1511 = vsub.f32 %v1350, %v1447
      %v1512 = vmul.f32 %v1448, 1.442695
      %v1513 = vpow.pop %v1512
      %v1514 = vmul.f32 %v1449, 1.442695
      %v1515 = vpow.pop %v1514
      %v1516 = vmul.f32 %v1450, 1.442695
      %v1517 = vpow.pop %v1516
      %v1518 = vmul.f32 %v1451, 1.442695
      %v1519 = vpow.pop %v1518
      %v1520 = vmul.f32 %v1452, 1.442695
      %v1521 = vpow.pop %v1520
      %v1522 = vmul.f32 %v1453, 1.442695
      %v1523 = vpow.pop %v1522
      %v1524 = vmul.f32 %v1454, 1.442695
      %v1525 = vpow.pop %v1524
      %v1526 = vmul.f32 %v1455, 1.442695
      %v1527 = vpow.pop %v1526
      %v1528 = vmul.f32 %v1456, 1.442695
      %v1529 = vpow.pop %v1528
      %v1530 = vmul.f32 %v1457, 1.442695
      %v1531 = vpow.pop %v1530
      %v1532 = vmul.f32 %v1458, 1.442695
      %v1533 = vpow.pop %v1532
      %v1534 = vmul.f32 %v1459, 1.442695
      %v1535 = vpow.pop %v1534
      %v1536 = vmul.f32 %v1460, 1.442695
      %v1537 = vpow.pop %v1536
      %v1538 = vmul.f32 %v1461, 1.442695
      %v1539 = vpow.pop %v1538
      %v1540 = vmul.f32 %v1462, 1.442695
      %v1541 = vpow.pop %v1540
      %v1542 = vmul.f32 %v1463, 1.442695
      %v1543 = vpow.pop %v1542
      %v1544 = vmul.f32 %v1464, 1.442695
      %v1545 = vpow.pop %v1544
      %v1546 = vmul.f32 %v1465, 1.442695
      %v1547 = vpow.pop %v1546
      %v1548 = vmul.f32 %v1466, 1.442695
      %v1549 = vpow.pop %v1548
      %v1550 = vmul.f32 %v1467, 1.442695
      %v1551 = vpow.pop %v1550
      %v1552 = vmul.f32 %v1468, 1.442695
      %v1553 = vpow.pop %v1552
      %v1554 = vmul.f32 %v1469, 1.442695
      %v1555 = vpow.pop %v1554
      %v1556 = vmul.f32 %v1470, 1.442695
      %v1557 = vpow.pop %v1556
      %v1558 = vmul.f32 %v1471, 1.442695
      %v1559 = vpow.pop %v1558
      %v1560 = vmul.f32 %v1472, 1.442695
      %v1561 = vpow.pop %v1560
      %v1562 = vmul.f32 %v1473, 1.442695
      %v1563 = vpow.pop %v1562
      %v1564 = vmul.f32 %v1474, 1.442695
      %v1565 = vpow.pop %v1564
      %v1566 = vmul.f32 %v1475, 1.442695
      %v1567 = vpow.pop %v1566
      %v1568 = vmul.f32 %v1476, 1.442695
      %v1569 = vpow.pop %v1568
      %v1570 = vmul.f32 %v1477, 1.442695
      %v1571 = vpow.pop %v1570
      %v1572 = vmul.f32 %v1478, 1.442695
      %v1573 = vpow.pop %v1572
      %v1574 = vmul.f32 %v1479, 1.442695
      %v1575 = vpow.pop %v1574
      %v1576 = vmul.f32 %v1480, 1.442695
      %v1577 = vpow.pop %v1576
      %v1578 = vmul.f32 %v1481, 1.442695
      %v1579 = vpow.pop %v1578
      %v1580 = vmul.f32 %v1482, 1.442695
      %v1581 = vpow.pop %v1580
      %v1582 = vmul.f32 %v1483, 1.442695
      %v1583 = vpow.pop %v1582
      %v1584 = vmul.f32 %v1484, 1.442695
      %v1585 = vpow.pop %v1584
      %v1586 = vmul.f32 %v1485, 1.442695
      %v1587 = vpow.pop %v1586
      %v1588 = vmul.f32 %v1486, 1.442695
      %v1589 = vpow.pop %v1588
      %v1590 = vmul.f32 %v1487, 1.442695
      %v1591 = vpow.pop %v1590
      %v1592 = vmul.f32 %v1488, 1.442695
      %v1593 = vpow.pop %v1592
      %v1594 = vmul.f32 %v1489, 1.442695
      %v1595 = vpow.pop %v1594
      %v1596 = vmul.f32 %v1490, 1.442695
      %v1597 = vpow.pop %v1596
      %v1598 = vmul.f32 %v1491, 1.442695
      %v1599 = vpow.pop %v1598
      %v1600 = vmul.f32 %v1492, 1.442695
      %v1601 = vpow.pop %v1600
      %v1602 = vmul.f32 %v1493, 1.442695
      %v1603 = vpow.pop %v1602
      %v1604 = vmul.f32 %v1494, 1.442695
      %v1605 = vpow.pop %v1604
      %v1606 = vmul.f32 %v1495, 1.442695
      %v1607 = vpow.pop %v1606
      %v1608 = vmul.f32 %v1496, 1.442695
      %v1609 = vpow.pop %v1608
      %v1610 = vmul.f32 %v1497, 1.442695
      %v1611 = vpow.pop %v1610
      %v1612 = vmul.f32 %v1498, 1.442695
      %v1613 = vpow.pop %v1612
      %v1614 = vmul.f32 %v1499, 1.442695
      %v1615 = vpow.pop %v1614
      %v1616 = vmul.f32 %v1500, 1.442695
      %v1617 = vpow.pop %v1616
      %v1618 = vmul.f32 %v1501, 1.442695
      %v1619 = vpow.pop %v1618
      %v1620 = vmul.f32 %v1502, 1.442695
      %v1621 = vpow.pop %v1620
      %v1622 = vmul.f32 %v1503, 1.442695
      %v1623 = vpow.pop %v1622
      %v1624 = vmul.f32 %v1504, 1.442695
      %v1625 = vpow.pop %v1624
      %v1626 = vmul.f32 %v1505, 1.442695
      %v1627 = vpow.pop %v1626
      %v1628 = vmul.f32 %v1506, 1.442695
      %v1629 = vpow.pop %v1628
      %v1630 = vmul.f32 %v1507, 1.442695
      %v1631 = vpow.pop %v1630
      %v1632 = vmul.f32 %v1508, 1.442695
      %v1633 = vpow.pop %v1632
      %v1634 = vmul.f32 %v1509, 1.442695
      %v1635 = vpow.pop %v1634
      %v1636 = vmul.f32 %v1510, 1.442695
      %v1637 = vpow.pop %v1636
      %v1638 = vmul.f32 %v1511, 1.442695
      %v1639 = vpow.pop %v1638
      %v1640 = vadd.f32 %v1513, %v1515
      %1641 = vadd.xlane.f32.xlu0 %v1640
      %v1642 = vpop.xlane.xlu0 %1641
      %v1643 = vadd.f32 %v1517, %v1519
      %1644 = vadd.xlane.f32.xlu0 %v1643
      %v1645 = vpop.xlane.xlu0 %1644
      %v1646 = vadd.f32 %v1521, %v1523
      %1647 = vadd.xlane.f32.xlu0 %v1646
      %v1648 = vpop.xlane.xlu0 %1647
      %v1649 = vadd.f32 %v1525, %v1527
      %1650 = vadd.xlane.f32.xlu0 %v1649
      %v1651 = vpop.xlane.xlu0 %1650
      %v1652 = vadd.f32 %v1529, %v1531
      %1653 = vadd.xlane.f32.xlu0 %v1652
      %v1654 = vpop.xlane.xlu0 %1653
      %v1655 = vadd.f32 %v1533, %v1535
      %1656 = vadd.xlane.f32.xlu0 %v1655
      %v1657 = vpop.xlane.xlu0 %1656
      %v1658 = vadd.f32 %v1537, %v1539
      %1659 = vadd.xlane.f32.xlu0 %v1658
      %v1660 = vpop.xlane.xlu0 %1659
      %v1661 = vadd.f32 %v1541, %v1543
      %1662 = vadd.xlane.f32.xlu0 %v1661
      %v1663 = vpop.xlane.xlu0 %1662
      %v1664 = vadd.f32 %v1545, %v1547
      %1665 = vadd.xlane.f32.xlu0 %v1664
      %v1666 = vpop.xlane.xlu0 %1665
      %v1667 = vadd.f32 %v1549, %v1551
      %1668 = vadd.xlane.f32.xlu0 %v1667
      %v1669 = vpop.xlane.xlu0 %1668
      %v1670 = vadd.f32 %v1553, %v1555
      %1671 = vadd.xlane.f32.xlu0 %v1670
      %v1672 = vpop.xlane.xlu0 %1671
      %v1673 = vadd.f32 %v1557, %v1559
      %1674 = vadd.xlane.f32.xlu0 %v1673
      %v1675 = vpop.xlane.xlu0 %1674
      %v1676 = vadd.f32 %v1561, %v1563
      %1677 = vadd.xlane.f32.xlu0 %v1676
      %v1678 = vpop.xlane.xlu0 %1677
      %v1679 = vadd.f32 %v1565, %v1567
      %1680 = vadd.xlane.f32.xlu0 %v1679
      %v1681 = vpop.xlane.xlu0 %1680
      %v1682 = vadd.f32 %v1569, %v1571
      %1683 = vadd.xlane.f32.xlu0 %v1682
      %v1684 = vpop.xlane.xlu0 %1683
      %v1685 = vadd.f32 %v1573, %v1575
      %1686 = vadd.xlane.f32.xlu0 %v1685
      %v1687 = vpop.xlane.xlu0 %1686
      %v1688 = vadd.f32 %v1577, %v1579
      %1689 = vadd.xlane.f32.xlu0 %v1688
      %v1690 = vpop.xlane.xlu0 %1689
      %v1691 = vadd.f32 %v1581, %v1583
      %1692 = vadd.xlane.f32.xlu0 %v1691
      %v1693 = vpop.xlane.xlu0 %1692
      %v1694 = vadd.f32 %v1585, %v1587
      %1695 = vadd.xlane.f32.xlu0 %v1694
      %v1696 = vpop.xlane.xlu0 %1695
      %v1697 = vadd.f32 %v1589, %v1591
      %1698 = vadd.xlane.f32.xlu0 %v1697
      %v1699 = vpop.xlane.xlu0 %1698
      %v1700 = vadd.f32 %v1593, %v1595
      %1701 = vadd.xlane.f32.xlu0 %v1700
      %v1702 = vpop.xlane.xlu0 %1701
      %v1703 = vadd.f32 %v1597, %v1599
      %1704 = vadd.xlane.f32.xlu0 %v1703
      %v1705 = vpop.xlane.xlu0 %1704
      %v1706 = vadd.f32 %v1601, %v1603
      %1707 = vadd.xlane.f32.xlu0 %v1706
      %v1708 = vpop.xlane.xlu0 %1707
      %v1709 = vadd.f32 %v1605, %v1607
      %1710 = vadd.xlane.f32.xlu0 %v1709
      %v1711 = vpop.xlane.xlu0 %1710
      %v1712 = vadd.f32 %v1609, %v1611
      %1713 = vadd.xlane.f32.xlu0 %v1712
      %v1714 = vpop.xlane.xlu0 %1713
      %v1715 = vadd.f32 %v1613, %v1615
      %1716 = vadd.xlane.f32.xlu0 %v1715
      %v1717 = vpop.xlane.xlu0 %1716
      %v1718 = vadd.f32 %v1617, %v1619
      %1719 = vadd.xlane.f32.xlu0 %v1718
      %v1720 = vpop.xlane.xlu0 %1719
      %v1721 = vadd.f32 %v1621, %v1623
      %1722 = vadd.xlane.f32.xlu0 %v1721
      %v1723 = vpop.xlane.xlu0 %1722
      %v1724 = vadd.f32 %v1625, %v1627
      %1725 = vadd.xlane.f32.xlu0 %v1724
      %v1726 = vpop.xlane.xlu0 %1725
      %v1727 = vadd.f32 %v1629, %v1631
      %1728 = vadd.xlane.f32.xlu0 %v1727
      %v1729 = vpop.xlane.xlu0 %1728
      %v1730 = vadd.f32 %v1633, %v1635
      %1731 = vadd.xlane.f32.xlu0 %v1730
      %v1732 = vpop.xlane.xlu0 %1731
      %v1733 = vadd.f32 %v1637, %v1639
      %1734 = vadd.xlane.f32.xlu0 %v1733
      %v1735 = vpop.xlane.xlu0 %1734
      %v1736 = vpack.c.bf16 %v1517, %v1513
      %v1737 = vpack.c.bf16 %v1519, %v1515
      %v1738 = vpack.c.bf16 %v1525, %v1521
      %v1739 = vpack.c.bf16 %v1527, %v1523
      %v1740 = vpack.c.bf16 %v1533, %v1529
      %v1741 = vpack.c.bf16 %v1535, %v1531
      %v1742 = vpack.c.bf16 %v1541, %v1537
      %v1743 = vpack.c.bf16 %v1543, %v1539
      %v1744 = vpack.c.bf16 %v1549, %v1545
      %v1745 = vpack.c.bf16 %v1551, %v1547
      %v1746 = vpack.c.bf16 %v1557, %v1553
      %v1747 = vpack.c.bf16 %v1559, %v1555
      %v1748 = vpack.c.bf16 %v1565, %v1561
      %v1749 = vpack.c.bf16 %v1567, %v1563
      %v1750 = vpack.c.bf16 %v1573, %v1569
      %v1751 = vpack.c.bf16 %v1575, %v1571
      %v1752 = vpack.c.bf16 %v1581, %v1577
      %v1753 = vpack.c.bf16 %v1583, %v1579
      %v1754 = vpack.c.bf16 %v1589, %v1585
      %v1755 = vpack.c.bf16 %v1591, %v1587
      %v1756 = vpack.c.bf16 %v1597, %v1593
      %v1757 = vpack.c.bf16 %v1599, %v1595
      %v1758 = vpack.c.bf16 %v1605, %v1601
      %v1759 = vpack.c.bf16 %v1607, %v1603
      %v1760 = vpack.c.bf16 %v1613, %v1609
      %v1761 = vpack.c.bf16 %v1615, %v1611
      %v1762 = vpack.c.bf16 %v1621, %v1617
      %v1763 = vpack.c.bf16 %v1623, %v1619
      %v1764 = vpack.c.bf16 %v1629, %v1625
      %v1765 = vpack.c.bf16 %v1631, %v1627
      %v1766 = vpack.c.bf16 %v1637, %v1633
      %v1767 = vpack.c.bf16 %v1639, %v1635
      %v1768 = vpack.c.bf16 %v1070, %v1066
      %v1769 = vpack.c.bf16 %v1072, %v1068
      %1770 = vmatprep.subr.bf16.mxu0 0
      %1771 = vmatpush1.bf16.xpose.msra.mxu0 0
      %1772 = vmatprep.subr.bf16.mxu0 0
      %1773 = vmatpush1.bf16.xpose.msra.mxu0 0
      %1774 = vmatprep.subr.bf16.mxu0 0
      %1775 = vmatpush1.bf16.xpose.msra.mxu0 0
      %1776 = vmatprep.subr.bf16.mxu0 0
      %1777 = vmatpush1.bf16.xpose.msra.mxu0 0
      %1778 = vmatprep.subr.bf16.mxu0 0
      %1779 = vmatpush1.bf16.xpose.msra.mxu0 0
      %1780 = vmatprep.subr.bf16.mxu0 0
      %1781 = vmatpush1.bf16.xpose.msra.mxu0 0
      %1782 = vmatprep.subr.bf16.mxu0 0
      %1783 = vmatpush1.bf16.xpose.msra.mxu0 0
      %1784 = vmatprep.subr.bf16.mxu0 %v1769
      %1785 = vmatpush1.bf16.xpose.msra.mxu0 %v1768
      %1786 = vmatprep.subr.bf16.mxu0 0
      %1787 = vmatpush2.bf16.xpose.msra.mxu0 0
      %1788 = vmatprep.subr.bf16.mxu0 0
      %1789 = vmatpush2.bf16.xpose.msra.mxu0 0
      %1790 = vmatprep.subr.bf16.mxu0 0
      %1791 = vmatpush2.bf16.xpose.msra.mxu0 0
      %1792 = vmatprep.subr.bf16.mxu0 0
      %1793 = vmatpush2.bf16.xpose.msra.mxu0 0
      %1794 = vmatprep.subr.bf16.mxu0 0
      %1795 = vmatpush2.bf16.xpose.msra.mxu0 0
      %1796 = vmatprep.subr.bf16.mxu0 0
      %1797 = vmatpush2.bf16.xpose.msra.mxu0 0
      %1798 = vmatprep.subr.bf16.mxu0 0
      %1799 = vmatpush2.bf16.xpose.msra.mxu0 0
      %1800 = vmatprep.subr.bf16.mxu0 0
      %1801 = vmatpush2.bf16.xpose.msra.mxu0 0
      %1802 = vmatprep.mubr.bf16.mxu0 %v1737
      %1803 = vmatmul.mubr.bf16.gmra.mxu0 %v1736
      %v1804 = vpop.f32.mrf.mxu0
      %v1805 = vadd.f32 0.0, %v1804
      %v1806 = vpop.f32.mrf.mxu0
      %v1807 = vpop.f32.mrf.mxu0
      %v1808 = vadd.f32 0.0, %v1807
      %v1809 = vpop.f32.mrf.mxu0
      %1810 = vmatprep.mubr.bf16.mxu0 %v1739
      %1811 = vmatmul.mubr.bf16.gmra.mxu0 %v1738
      %v1812 = vpop.f32.mrf.mxu0
      %v1813 = vadd.f32 0.0, %v1812
      %v1814 = vpop.f32.mrf.mxu0
      %v1815 = vpop.f32.mrf.mxu0
      %v1816 = vadd.f32 0.0, %v1815
      %v1817 = vpop.f32.mrf.mxu0
      %1818 = vmatprep.mubr.bf16.mxu0 %v1741
      %1819 = vmatmul.mubr.bf16.gmra.mxu0 %v1740
      %v1820 = vpop.f32.mrf.mxu0
      %v1821 = vadd.f32 0.0, %v1820
      %v1822 = vpop.f32.mrf.mxu0
      %v1823 = vpop.f32.mrf.mxu0
      %v1824 = vadd.f32 0.0, %v1823
      %v1825 = vpop.f32.mrf.mxu0
      %1826 = vmatprep.mubr.bf16.mxu0 %v1743
      %1827 = vmatmul.mubr.bf16.gmra.mxu0 %v1742
      %v1828 = vpop.f32.mrf.mxu0
      %v1829 = vadd.f32 0.0, %v1828
      %v1830 = vpop.f32.mrf.mxu0
      %v1831 = vpop.f32.mrf.mxu0
      %v1832 = vadd.f32 0.0, %v1831
      %v1833 = vpop.f32.mrf.mxu0
      %1834 = vmatprep.mubr.bf16.mxu0 %v1745
      %1835 = vmatmul.mubr.bf16.gmra.mxu0 %v1744
      %v1836 = vpop.f32.mrf.mxu0
      %v1837 = vadd.f32 0.0, %v1836
      %v1838 = vpop.f32.mrf.mxu0
      %v1839 = vpop.f32.mrf.mxu0
      %v1840 = vadd.f32 0.0, %v1839
      %v1841 = vpop.f32.mrf.mxu0
      %1842 = vmatprep.mubr.bf16.mxu0 %v1747
      %1843 = vmatmul.mubr.bf16.gmra.mxu0 %v1746
      %v1844 = vpop.f32.mrf.mxu0
      %v1845 = vadd.f32 0.0, %v1844
      %v1846 = vpop.f32.mrf.mxu0
      %v1847 = vpop.f32.mrf.mxu0
      %v1848 = vadd.f32 0.0, %v1847
      %v1849 = vpop.f32.mrf.mxu0
      %1850 = vmatprep.mubr.bf16.mxu0 %v1749
      %1851 = vmatmul.mubr.bf16.gmra.mxu0 %v1748
      %v1852 = vpop.f32.mrf.mxu0
      %v1853 = vadd.f32 0.0, %v1852
      %v1854 = vpop.f32.mrf.mxu0
      %v1855 = vpop.f32.mrf.mxu0
      %v1856 = vadd.f32 0.0, %v1855
      %v1857 = vpop.f32.mrf.mxu0
      %1858 = vmatprep.mubr.bf16.mxu0 %v1751
      %1859 = vmatmul.mubr.bf16.gmra.mxu0 %v1750
      %v1860 = vpop.f32.mrf.mxu0
      %v1861 = vadd.f32 0.0, %v1860
      %v1862 = vpop.f32.mrf.mxu0
      %v1863 = vpop.f32.mrf.mxu0
      %v1864 = vadd.f32 0.0, %v1863
      %v1865 = vpop.f32.mrf.mxu0
      %1866 = vmatprep.mubr.bf16.mxu0 %v1753
      %1867 = vmatmul.mubr.bf16.gmra.mxu0 %v1752
      %v1868 = vpop.f32.mrf.mxu0
      %v1869 = vadd.f32 0.0, %v1868
      %v1870 = vpop.f32.mrf.mxu0
      %v1871 = vpop.f32.mrf.mxu0
      %v1872 = vadd.f32 0.0, %v1871
      %v1873 = vpop.f32.mrf.mxu0
      %1874 = vmatprep.mubr.bf16.mxu0 %v1755
      %1875 = vmatmul.mubr.bf16.gmra.mxu0 %v1754
      %v1876 = vpop.f32.mrf.mxu0
      %v1877 = vadd.f32 0.0, %v1876
      %v1878 = vpop.f32.mrf.mxu0
      %v1879 = vpop.f32.mrf.mxu0
      %v1880 = vadd.f32 0.0, %v1879
      %v1881 = vpop.f32.mrf.mxu0
      %1882 = vmatprep.mubr.bf16.mxu0 %v1757
      %1883 = vmatmul.mubr.bf16.gmra.mxu0 %v1756
      %v1884 = vpop.f32.mrf.mxu0
      %v1885 = vadd.f32 0.0, %v1884
      %v1886 = vpop.f32.mrf.mxu0
      %v1887 = vpop.f32.mrf.mxu0
      %v1888 = vadd.f32 0.0, %v1887
      %v1889 = vpop.f32.mrf.mxu0
      %1890 = vmatprep.mubr.bf16.mxu0 %v1759
      %1891 = vmatmul.mubr.bf16.gmra.mxu0 %v1758
      %v1892 = vpop.f32.mrf.mxu0
      %v1893 = vadd.f32 0.0, %v1892
      %v1894 = vpop.f32.mrf.mxu0
      %v1895 = vpop.f32.mrf.mxu0
      %v1896 = vadd.f32 0.0, %v1895
      %v1897 = vpop.f32.mrf.mxu0
      %1898 = vmatprep.mubr.bf16.mxu0 %v1761
      %1899 = vmatmul.mubr.bf16.gmra.mxu0 %v1760
      %v1900 = vpop.f32.mrf.mxu0
      %v1901 = vadd.f32 0.0, %v1900
      %v1902 = vpop.f32.mrf.mxu0
      %v1903 = vpop.f32.mrf.mxu0
      %v1904 = vadd.f32 0.0, %v1903
      %v1905 = vpop.f32.mrf.mxu0
      %1906 = vmatprep.mubr.bf16.mxu0 %v1763
      %1907 = vmatmul.mubr.bf16.gmra.mxu0 %v1762
      %v1908 = vpop.f32.mrf.mxu0
      %v1909 = vadd.f32 0.0, %v1908
      %v1910 = vpop.f32.mrf.mxu0
      %v1911 = vpop.f32.mrf.mxu0
      %v1912 = vadd.f32 0.0, %v1911
      %v1913 = vpop.f32.mrf.mxu0
      %1914 = vmatprep.mubr.bf16.mxu0 %v1765
      %1915 = vmatmul.mubr.bf16.gmra.mxu0 %v1764
      %v1916 = vpop.f32.mrf.mxu0
      %v1917 = vadd.f32 0.0, %v1916
      %v1918 = vpop.f32.mrf.mxu0
      %v1919 = vpop.f32.mrf.mxu0
      %v1920 = vadd.f32 0.0, %v1919
      %v1921 = vpop.f32.mrf.mxu0
      %1922 = vmatprep.mubr.bf16.mxu0 %v1767
      %1923 = vmatmul.mubr.bf16.gmra.mxu0 %v1766
      %v1924 = vpop.f32.mrf.mxu0
      %v1925 = vadd.f32 0.0, %v1924
      %v1926 = vpop.f32.mrf.mxu0
      %v1927 = vpop.f32.mrf.mxu0
      %v1928 = vadd.f32 0.0, %v1927
      %v1929 = vpop.f32.mrf.mxu0
      %1930 = vdwg.mxu0
      %v1931 = vrcp.pop %v1642
      %v1932 = vrcp.pop %v1645
      %v1933 = vrcp.pop %v1648
      %v1934 = vrcp.pop %v1651
      %v1935 = vrcp.pop %v1654
      %v1936 = vrcp.pop %v1657
      %v1937 = vrcp.pop %v1660
      %v1938 = vrcp.pop %v1663
      %v1939 = vrcp.pop %v1666
      %v1940 = vrcp.pop %v1669
      %v1941 = vrcp.pop %v1672
      %v1942 = vrcp.pop %v1675
      %v1943 = vrcp.pop %v1678
      %v1944 = vrcp.pop %v1681
      %v1945 = vrcp.pop %v1684
      %v1946 = vrcp.pop %v1687
      %v1947 = vrcp.pop %v1690
      %v1948 = vrcp.pop %v1693
      %v1949 = vrcp.pop %v1696
      %v1950 = vrcp.pop %v1699
      %v1951 = vrcp.pop %v1702
      %v1952 = vrcp.pop %v1705
      %v1953 = vrcp.pop %v1708
      %v1954 = vrcp.pop %v1711
      %v1955 = vrcp.pop %v1714
      %v1956 = vrcp.pop %v1717
      %v1957 = vrcp.pop %v1720
      %v1958 = vrcp.pop %v1723
      %v1959 = vrcp.pop %v1726
      %v1960 = vrcp.pop %v1729
      %v1961 = vrcp.pop %v1732
      %v1962 = vrcp.pop %v1735
      %v1963 = vmul.f32 %v1805, %v1931
      %v1964 = vmul.f32 %v1808, %v1932
      %v1965 = vmul.f32 %v1813, %v1933
      %v1966 = vmul.f32 %v1816, %v1934
      %v1967 = vmul.f32 %v1821, %v1935
      %v1968 = vmul.f32 %v1824, %v1936
      %v1969 = vmul.f32 %v1829, %v1937
      %v1970 = vmul.f32 %v1832, %v1938
      %v1971 = vmul.f32 %v1837, %v1939
      %v1972 = vmul.f32 %v1840, %v1940
      %v1973 = vmul.f32 %v1845, %v1941
      %v1974 = vmul.f32 %v1848, %v1942
      %v1975 = vmul.f32 %v1853, %v1943
      %v1976 = vmul.f32 %v1856, %v1944
      %v1977 = vmul.f32 %v1861, %v1945
      %v1978 = vmul.f32 %v1864, %v1946
      %v1979 = vmul.f32 %v1869, %v1947
      %v1980 = vmul.f32 %v1872, %v1948
      %v1981 = vmul.f32 %v1877, %v1949
      %v1982 = vmul.f32 %v1880, %v1950
      %v1983 = vmul.f32 %v1885, %v1951
      %v1984 = vmul.f32 %v1888, %v1952
      %v1985 = vmul.f32 %v1893, %v1953
      %v1986 = vmul.f32 %v1896, %v1954
      %v1987 = vmul.f32 %v1901, %v1955
      %v1988 = vmul.f32 %v1904, %v1956
      %v1989 = vmul.f32 %v1909, %v1957
      %v1990 = vmul.f32 %v1912, %v1958
      %v1991 = vmul.f32 %v1917, %v1959
      %v1992 = vmul.f32 %v1920, %v1960
      %v1993 = vmul.f32 %v1925, %v1961
      %v1994 = vmul.f32 %v1928, %v1962
      %v1995 = vld [vmem:[%s4] sm:$0xf]
      %v1996 = vld [vmem:[%s4 + $0x4] sm:$0xf]
      %v1997 = vld [vmem:[%s4 + $0x8] sm:$0xf]
      %v1998 = vld [vmem:[%s4 + $0xc] sm:$0xf]
      %v1999 = vpack.c.bf16 %v1964, %v1963
      %v2000 = vpack.c.bf16 %v1966, %v1965
      %v2001 = vpack.c.bf16 %v1968, %v1967
      %v2002 = vpack.c.bf16 %v1970, %v1969
      %v2003 = vpack.c.bf16 %v1972, %v1971
      %v2004 = vpack.c.bf16 %v1974, %v1973
      %v2005 = vpack.c.bf16 %v1976, %v1975
      %v2006 = vpack.c.bf16 %v1978, %v1977
      %v2007 = vpack.c.bf16 %v1980, %v1979
      %v2008 = vpack.c.bf16 %v1982, %v1981
      %v2009 = vpack.c.bf16 %v1984, %v1983
      %v2010 = vpack.c.bf16 %v1986, %v1985
      %v2011 = vpack.c.bf16 %v1988, %v1987
      %v2012 = vpack.c.bf16 %v1990, %v1989
      %v2013 = vpack.c.bf16 %v1992, %v1991
      %v2014 = vpack.c.bf16 %v1994, %v1993
      %2015 = vset.pattern.permute.xlu0 2
      %2016 = vperm.xlu0 %2015, %v289
      %v2017 = vpop.permute.xlu0 %2016
      %2019 = vset.pattern.permute.xlu0 2
      %2020 = vperm.xlu0 %2019, %v290
      %v2021 = vpop.permute.xlu0 %2020
      %2023 = vset.pattern.permute.xlu0 2
      %2024 = vperm.xlu0 %2023, %v291
      %v2025 = vpop.permute.xlu0 %2024
      %2027 = vset.pattern.permute.xlu0 2
      %2028 = vperm.xlu0 %2027, %v292
      %v2029 = vpop.permute.xlu0 %2028
      %v2035 = vunpack.c.l.b16 %v1995
      %v2036 = vunpack.c.l.b16 %v1996
      %v2037 = vunpack.c.l.b16 %v1997
      %v2038 = vunpack.c.l.b16 %v1998
      %v2039 = vpack.c.b16 %v2036, %v2035
      %v2040 = vpack.c.b16 %v2038, %v2037
      %v2042 = vsel %vm1110, %v2039, 0
      %v2045 = vsel %vm1110, %v2040, 0
      %v2048 = vsel %vm1110, %v1999, 0
      %v2051 = vsel %vm1110, %v2000, 0
      %v2054 = vsel %vm1110, %v2001, 0
      %v2057 = vsel %vm1110, %v2002, 0
      %v2060 = vsel %vm1110, %v2003, 0
      %v2063 = vsel %vm1110, %v2004, 0
      %v2066 = vsel %vm1110, %v2005, 0
      %v2069 = vsel %vm1110, %v2006, 0
      %v2072 = vsel %vm1110, %v2007, 0
      %v2075 = vsel %vm1110, %v2008, 0
      %v2078 = vsel %vm1110, %v2009, 0
      %v2081 = vsel %vm1110, %v2010, 0
      %v2084 = vsel %vm1110, %v2011, 0
      %v2087 = vsel %vm1110, %v2012, 0
      %v2090 = vsel %vm1110, %v2013, 0
      %v2093 = vsel %vm1110, %v2014, 0
      %2095 = vmatprep.subr.bf16.mxu0 0
      %2096 = vmatpush1.bf16.xpose.msra.mxu0 %v2069
      %2097 = vmatprep.subr.bf16.mxu0 0
      %2098 = vmatpush1.bf16.xpose.msra.mxu0 %v2066
      %2099 = vmatprep.subr.bf16.mxu0 0
      %2100 = vmatpush1.bf16.xpose.msra.mxu0 %v2063
      %2101 = vmatprep.subr.bf16.mxu0 0
      %2102 = vmatpush1.bf16.xpose.msra.mxu0 %v2060
      %2103 = vmatprep.subr.bf16.mxu0 0
      %2104 = vmatpush1.bf16.xpose.msra.mxu0 %v2057
      %2105 = vmatprep.subr.bf16.mxu0 0
      %2106 = vmatpush1.bf16.xpose.msra.mxu0 %v2054
      %2107 = vmatprep.subr.bf16.mxu0 0
      %2108 = vmatpush1.bf16.xpose.msra.mxu0 %v2051
      %2109 = vmatprep.subr.bf16.mxu0 0
      %2110 = vmatpush1.bf16.xpose.msra.mxu0 %v2048
      %2111 = vmatprep.subr.bf16.mxu0 0
      %2112 = vmatpush2.bf16.xpose.msra.mxu0 %v2093
      %2113 = vmatprep.subr.bf16.mxu0 0
      %2114 = vmatpush2.bf16.xpose.msra.mxu0 %v2090
      %2115 = vmatprep.subr.bf16.mxu0 0
      %2116 = vmatpush2.bf16.xpose.msra.mxu0 %v2087
      %2117 = vmatprep.subr.bf16.mxu0 0
      %2118 = vmatpush2.bf16.xpose.msra.mxu0 %v2084
      %2119 = vmatprep.subr.bf16.mxu0 0
      %2120 = vmatpush2.bf16.xpose.msra.mxu0 %v2081
      %2121 = vmatprep.subr.bf16.mxu0 0
      %2122 = vmatpush2.bf16.xpose.msra.mxu0 %v2078
      %2123 = vmatprep.subr.bf16.mxu0 0
      %2124 = vmatpush2.bf16.xpose.msra.mxu0 %v2075
      %2125 = vmatprep.subr.bf16.mxu0 0
      %2126 = vmatpush2.bf16.xpose.msra.mxu0 %v2072
      %2127 = vmatprep.mubr.bf16.mxu0 0
      %2128 = vmatmul.mubr.bf16.gmra.mxu0 %v2042
      %v2129 = vpop.f32.mrf.mxu0
      %v2130 = vadd.f32 %v2017, %v2129
      %v2131 = vpop.f32.mrf.mxu0
      %v2132 = vadd.f32 %v2017, %v2131
      %v2133 = vpop.f32.mrf.mxu0
      %v2134 = vadd.f32 %v2021, %v2133
      %v2135 = vpop.f32.mrf.mxu0
      %v2136 = vadd.f32 %v2021, %v2135
      %2137 = vmatprep.mubr.bf16.mxu0 0
      %2138 = vmatmul.mubr.bf16.gmra.mxu0 %v2045
      %v2139 = vpop.f32.mrf.mxu0
      %v2140 = vadd.f32 %v2025, %v2139
      %v2141 = vpop.f32.mrf.mxu0
      %v2142 = vadd.f32 %v2025, %v2141
      %v2143 = vpop.f32.mrf.mxu0
      %v2144 = vadd.f32 %v2029, %v2143
      %v2145 = vpop.f32.mrf.mxu0
      %v2146 = vadd.f32 %v2029, %v2145
      %2147 = vdwg.mxu0
      %v2148 = vadd.f32 %v2130, %v273
      %v2149 = vadd.f32 %v2132, %v274
      %v2150 = vadd.f32 %v2134, %v275
      %v2151 = vadd.f32 %v2136, %v276
      %v2152 = vadd.f32 %v2140, %v277
      %v2153 = vadd.f32 %v2142, %v278
      %v2154 = vadd.f32 %v2144, %v279
      %v2155 = vadd.f32 %v2146, %v280
      %2156 = vmatprep.subr.mxu0 0.0
      %2157 = vmatpush1.msra.mxu0 0.0
      %2158 = vmatprep.subr.mxu0 0.0
      %2159 = vmatpush1.msra.mxu0 0.0
      %2160 = vmatprep.subr.mxu0 0.0
      %2161 = vmatpush1.msra.mxu0 0.0
      %2162 = vmatprep.subr.mxu0 0.0
      %2163 = vmatpush1.msra.mxu0 0.0
      %2164 = vmatprep.subr.mxu0 0.0
      %2165 = vmatpush1.msra.mxu0 0.0
      %2166 = vmatprep.subr.mxu0 0.0
      %2167 = vmatpush1.msra.mxu0 0.0
      %2168 = vmatprep.subr.mxu0 0.0
      %2169 = vmatpush1.msra.mxu0 0.0
      %2170 = vmatprep.subr.mxu0 0.0
      %2171 = vmatpush1.msra.mxu0 0.0
      %2172 = vmatprep.subr.mxu0 0.0
      %2173 = vmatpush1.msra.mxu0 0.0
      %2174 = vmatprep.subr.mxu0 0.0
      %2175 = vmatpush1.msra.mxu0 0.0
      %2176 = vmatprep.subr.mxu0 0.0
      %2177 = vmatpush1.msra.mxu0 0.0
      %2178 = vmatprep.subr.mxu0 0.0
      %2179 = vmatpush1.msra.mxu0 0.0
      %2180 = vmatprep.subr.mxu0 %v2155
      %2181 = vmatpush1.msra.mxu0 %v2154
      %2182 = vmatprep.subr.mxu0 %v2153
      %2183 = vmatpush1.msra.mxu0 %v2152
      %2184 = vmatprep.subr.mxu0 %v2151
      %2185 = vmatpush1.msra.mxu0 %v2150
      %2186 = vmatprep.subr.mxu0 %v2149
      %2187 = vmatpush1.msra.mxu0 %v2148
      %2188 = vmatprep.subr.mxu0 0.0
      %2189 = vmatpush2.msra.mxu0 0.0
      %2190 = vmatprep.subr.mxu0 0.0
      %2191 = vmatpush2.msra.mxu0 0.0
      %2192 = vmatprep.subr.mxu0 0.0
      %2193 = vmatpush2.msra.mxu0 0.0
      %2194 = vmatprep.subr.mxu0 0.0
      %2195 = vmatpush2.msra.mxu0 0.0
      %2196 = vmatprep.subr.mxu0 0.0
      %2197 = vmatpush2.msra.mxu0 0.0
      %2198 = vmatprep.subr.mxu0 0.0
      %2199 = vmatpush2.msra.mxu0 0.0
      %2200 = vmatprep.subr.mxu0 0.0
      %2201 = vmatpush2.msra.mxu0 0.0
      %2202 = vmatprep.subr.mxu0 0.0
      %2203 = vmatpush2.msra.mxu0 0.0
      %2204 = vmatprep.subr.mxu0 0.0
      %2205 = vmatpush2.msra.mxu0 0.0
      %2206 = vmatprep.subr.mxu0 0.0
      %2207 = vmatpush2.msra.mxu0 0.0
      %2208 = vmatprep.subr.mxu0 0.0
      %2209 = vmatpush2.msra.mxu0 0.0
      %2210 = vmatprep.subr.mxu0 0.0
      %2211 = vmatpush2.msra.mxu0 0.0
      %2212 = vmatprep.subr.mxu0 0.0
      %2213 = vmatpush2.msra.mxu0 0.0
      %2214 = vmatprep.subr.mxu0 0.0
      %2215 = vmatpush2.msra.mxu0 0.0
      %2216 = vmatprep.subr.mxu0 0.0
      %2217 = vmatpush2.msra.mxu0 0.0
      %2218 = vmatprep.subr.mxu0 0.0
      %2219 = vmatpush2.msra.mxu0 0.0
      %2220 = vmatprep.mubr.f32.mxu0 0.0
      %2221 = vmatmul.mubr.f32.gmra.mxu0 %v574
      %v2222 = vpop.f32.mrf.mxu0
      %v2223 = vadd.f32 0.0, %v2222
      %v2224 = vpop.f32.mrf.mxu0
      %v2225 = vadd.f32 0.0, %v2224
      %2226 = vmatprep.mubr.f32.mxu0 0.0
      %2227 = vmatmul.mubr.f32.gmra.mxu0 %v577
      %v2228 = vpop.f32.mrf.mxu0
      %v2229 = vadd.f32 0.0, %v2228
      %v2230 = vpop.f32.mrf.mxu0
      %v2231 = vadd.f32 0.0, %v2230
      %2232 = vmatprep.mubr.f32.mxu0 0.0
      %2233 = vmatmul.mubr.f32.gmra.mxu0 %v580
      %v2234 = vpop.f32.mrf.mxu0
      %v2235 = vadd.f32 0.0, %v2234
      %v2236 = vpop.f32.mrf.mxu0
      %v2237 = vadd.f32 0.0, %v2236
      %2238 = vmatprep.mubr.f32.mxu0 0.0
      %2239 = vmatmul.mubr.f32.gmra.mxu0 %v583
      %v2240 = vpop.f32.mrf.mxu0
      %v2241 = vadd.f32 0.0, %v2240
      %v2242 = vpop.f32.mrf.mxu0
      %v2243 = vadd.f32 0.0, %v2242
      %2244 = vdwg.mxu0
      %v2245 = vadd.f32 %v2223, %v2225
      %2246 = vadd.xlane.f32.xlu0 %v2245
      %v2247 = vpop.xlane.xlu0 %2246
      %v2248 = vadd.f32 %v2229, %v2231
      %2249 = vadd.xlane.f32.xlu0 %v2248
      %v2250 = vpop.xlane.xlu0 %2249
      %v2251 = vadd.f32 %v2235, %v2237
      %2252 = vadd.xlane.f32.xlu0 %v2251
      %v2253 = vpop.xlane.xlu0 %2252
      %v2254 = vadd.f32 %v2241, %v2243
      %2255 = vadd.xlane.f32.xlu0 %v2254
      %v2256 = vpop.xlane.xlu0 %2255
      %v2257 = vmul.f32 %v2247, 0.0009765625
      %v2258 = vmul.f32 %v2250, 0.0009765625
      %v2259 = vmul.f32 %v2253, 0.0009765625
      %v2260 = vmul.f32 %v2256, 0.0009765625
      %v2261 = vsub.f32 %v2148, %v2257
      %v2262 = vsub.f32 %v2149, %v2257
      %v2263 = vsub.f32 %v2150, %v2258
      %v2264 = vsub.f32 %v2151, %v2258
      %v2265 = vsub.f32 %v2152, %v2259
      %v2266 = vsub.f32 %v2153, %v2259
      %v2267 = vsub.f32 %v2154, %v2260
      %v2268 = vsub.f32 %v2155, %v2260
      %v2269 = vmul.f32 %v2261, %v2261
      %v2270 = vmul.f32 %v2262, %v2262
      %v2271 = vmul.f32 %v2263, %v2263
      %v2272 = vmul.f32 %v2264, %v2264
      %v2273 = vmul.f32 %v2265, %v2265
      %v2274 = vmul.f32 %v2266, %v2266
      %v2275 = vmul.f32 %v2267, %v2267
      %v2276 = vmul.f32 %v2268, %v2268
      %2277 = vmatprep.subr.mxu0 0.0
      %2278 = vmatpush1.msra.mxu0 0.0
      %2279 = vmatprep.subr.mxu0 0.0
      %2280 = vmatpush1.msra.mxu0 0.0
      %2281 = vmatprep.subr.mxu0 0.0
      %2282 = vmatpush1.msra.mxu0 0.0
      %2283 = vmatprep.subr.mxu0 0.0
      %2284 = vmatpush1.msra.mxu0 0.0
      %2285 = vmatprep.subr.mxu0 0.0
      %2286 = vmatpush1.msra.mxu0 0.0
      %2287 = vmatprep.subr.mxu0 0.0
      %2288 = vmatpush1.msra.mxu0 0.0
      %2289 = vmatprep.subr.mxu0 0.0
      %2290 = vmatpush1.msra.mxu0 0.0
      %2291 = vmatprep.subr.mxu0 0.0
      %2292 = vmatpush1.msra.mxu0 0.0
      %2293 = vmatprep.subr.mxu0 0.0
      %2294 = vmatpush1.msra.mxu0 0.0
      %2295 = vmatprep.subr.mxu0 0.0
      %2296 = vmatpush1.msra.mxu0 0.0
      %2297 = vmatprep.subr.mxu0 0.0
      %2298 = vmatpush1.msra.mxu0 0.0
      %2299 = vmatprep.subr.mxu0 0.0
      %2300 = vmatpush1.msra.mxu0 0.0
      %2301 = vmatprep.subr.mxu0 %v2276
      %2302 = vmatpush1.msra.mxu0 %v2275
      %2303 = vmatprep.subr.mxu0 %v2274
      %2304 = vmatpush1.msra.mxu0 %v2273
      %2305 = vmatprep.subr.mxu0 %v2272
      %2306 = vmatpush1.msra.mxu0 %v2271
      %2307 = vmatprep.subr.mxu0 %v2270
      %2308 = vmatpush1.msra.mxu0 %v2269
      %2309 = vmatprep.subr.mxu0 0.0
      %2310 = vmatpush2.msra.mxu0 0.0
      %2311 = vmatprep.subr.mxu0 0.0
      %2312 = vmatpush2.msra.mxu0 0.0
      %2313 = vmatprep.subr.mxu0 0.0
      %2314 = vmatpush2.msra.mxu0 0.0
      %2315 = vmatprep.subr.mxu0 0.0
      %2316 = vmatpush2.msra.mxu0 0.0
      %2317 = vmatprep.subr.mxu0 0.0
      %2318 = vmatpush2.msra.mxu0 0.0
      %2319 = vmatprep.subr.mxu0 0.0
      %2320 = vmatpush2.msra.mxu0 0.0
      %2321 = vmatprep.subr.mxu0 0.0
      %2322 = vmatpush2.msra.mxu0 0.0
      %2323 = vmatprep.subr.mxu0 0.0
      %2324 = vmatpush2.msra.mxu0 0.0
      %2325 = vmatprep.subr.mxu0 0.0
      %2326 = vmatpush2.msra.mxu0 0.0
      %2327 = vmatprep.subr.mxu0 0.0
      %2328 = vmatpush2.msra.mxu0 0.0
      %2329 = vmatprep.subr.mxu0 0.0
      %2330 = vmatpush2.msra.mxu0 0.0
      %2331 = vmatprep.subr.mxu0 0.0
      %2332 = vmatpush2.msra.mxu0 0.0
      %2333 = vmatprep.subr.mxu0 0.0
      %2334 = vmatpush2.msra.mxu0 0.0
      %2335 = vmatprep.subr.mxu0 0.0
      %2336 = vmatpush2.msra.mxu0 0.0
      %2337 = vmatprep.subr.mxu0 0.0
      %2338 = vmatpush2.msra.mxu0 0.0
      %2339 = vmatprep.subr.mxu0 0.0
      %2340 = vmatpush2.msra.mxu0 0.0
      %2341 = vmatprep.mubr.f32.mxu0 0.0
      %2342 = vmatmul.mubr.f32.gmra.mxu0 %v574
      %v2343 = vpop.f32.mrf.mxu0
      %v2344 = vadd.f32 0.0, %v2343
      %v2345 = vpop.f32.mrf.mxu0
      %v2346 = vadd.f32 0.0, %v2345
      %2347 = vmatprep.mubr.f32.mxu0 0.0
      %2348 = vmatmul.mubr.f32.gmra.mxu0 %v577
      %v2349 = vpop.f32.mrf.mxu0
      %v2350 = vadd.f32 0.0, %v2349
      %v2351 = vpop.f32.mrf.mxu0
      %v2352 = vadd.f32 0.0, %v2351
      %2353 = vmatprep.mubr.f32.mxu0 0.0
      %2354 = vmatmul.mubr.f32.gmra.mxu0 %v580
      %v2355 = vpop.f32.mrf.mxu0
      %v2356 = vadd.f32 0.0, %v2355
      %v2357 = vpop.f32.mrf.mxu0
      %v2358 = vadd.f32 0.0, %v2357
      %2359 = vmatprep.mubr.f32.mxu0 0.0
      %2360 = vmatmul.mubr.f32.gmra.mxu0 %v583
      %v2361 = vpop.f32.mrf.mxu0
      %v2362 = vadd.f32 0.0, %v2361
      %v2363 = vpop.f32.mrf.mxu0
      %v2364 = vadd.f32 0.0, %v2363
      %2365 = vdwg.mxu0
      %v2366 = vadd.f32 %v2344, %v2346
      %2367 = vadd.xlane.f32.xlu0 %v2366
      %v2368 = vpop.xlane.xlu0 %2367
      %v2369 = vadd.f32 %v2350, %v2352
      %2370 = vadd.xlane.f32.xlu0 %v2369
      %v2371 = vpop.xlane.xlu0 %2370
      %v2372 = vadd.f32 %v2356, %v2358
      %2373 = vadd.xlane.f32.xlu0 %v2372
      %v2374 = vpop.xlane.xlu0 %2373
      %v2375 = vadd.f32 %v2362, %v2364
      %2376 = vadd.xlane.f32.xlu0 %v2375
      %v2377 = vpop.xlane.xlu0 %2376
      %v2378 = vmul.f32 %v2368, 0.0009765625
      %v2379 = vmul.f32 %v2371, 0.0009765625
      %v2380 = vmul.f32 %v2374, 0.0009765625
      %v2381 = vmul.f32 %v2377, 0.0009765625
      %v2382 = vadd.f32 %v2378, 1e-05
      %v2383 = vadd.f32 %v2379, 1e-05
      %v2384 = vadd.f32 %v2380, 1e-05
      %v2385 = vadd.f32 %v2381, 1e-05
      %v2386 = vrsqrt.pop %v2382
      %v2387 = vrsqrt.pop %v2383
      %v2388 = vrsqrt.pop %v2384
      %v2389 = vrsqrt.pop %v2385
      %v2390 = vmul.f32 %v2261, %v2386
      %v2391 = vmul.f32 %v2262, %v2386
      %v2392 = vmul.f32 %v2263, %v2387
      %v2393 = vmul.f32 %v2264, %v2387
      %v2394 = vmul.f32 %v2265, %v2388
      %v2395 = vmul.f32 %v2266, %v2388
      %v2396 = vmul.f32 %v2267, %v2389
      %v2397 = vmul.f32 %v2268, %v2389
      %2398 = vset.pattern.permute.xlu0 5
      %2399 = vperm.xlu0 %2398, %v289
      %v2400 = vpop.permute.xlu0 %2399
      %2402 = vset.pattern.permute.xlu0 5
      %2403 = vperm.xlu0 %2402, %v290
      %v2404 = vpop.permute.xlu0 %2403
      %2406 = vset.pattern.permute.xlu0 5
      %2407 = vperm.xlu0 %2406, %v291
      %v2408 = vpop.permute.xlu0 %2407
      %2410 = vset.pattern.permute.xlu0 5
      %2411 = vperm.xlu0 %2410, %v292
      %v2412 = vpop.permute.xlu0 %2411
      %v2414 = vmul.f32 %v2390, %v2400
      %v2415 = vmul.f32 %v2391, %v2400
      %v2416 = vmul.f32 %v2392, %v2404
      %v2417 = vmul.f32 %v2393, %v2404
      %v2418 = vmul.f32 %v2394, %v2408
      %v2419 = vmul.f32 %v2395, %v2408
      %v2420 = vmul.f32 %v2396, %v2412
      %v2421 = vmul.f32 %v2397, %v2412
      %2422 = vset.pattern.permute.xlu0 6
      %2423 = vperm.xlu0 %2422, %v289
      %v2424 = vpop.permute.xlu0 %2423
      %2426 = vset.pattern.permute.xlu0 6
      %2427 = vperm.xlu0 %2426, %v290
      %v2428 = vpop.permute.xlu0 %2427
      %2430 = vset.pattern.permute.xlu0 6
      %2431 = vperm.xlu0 %2430, %v291
      %v2432 = vpop.permute.xlu0 %2431
      %2434 = vset.pattern.permute.xlu0 6
      %2435 = vperm.xlu0 %2434, %v292
      %v2436 = vpop.permute.xlu0 %2435
      %v2438 = vadd.f32 %v2414, %v2424
      %v2439 = vadd.f32 %v2415, %v2424
      %v2440 = vadd.f32 %v2416, %v2428
      %v2441 = vadd.f32 %v2417, %v2428
      %v2442 = vadd.f32 %v2418, %v2432
      %v2443 = vadd.f32 %v2419, %v2432
      %v2444 = vadd.f32 %v2420, %v2436
      %v2445 = vadd.f32 %v2421, %v2436
      %2446 = vst [vmem:[%s271] sm:$0xff] %v2438
      %2447 = vst [vmem:[%s271 + $0x8] sm:$0xff] %v2439
      %2448 = vst [vmem:[%s271 + $0x10] sm:$0xff] %v2440
      %2449 = vst [vmem:[%s271 + $0x18] sm:$0xff] %v2441
      %2450 = vst [vmem:[%s271 + $0x20] sm:$0xff] %v2442
      %2451 = vst [vmem:[%s271 + $0x28] sm:$0xff] %v2443
      %2452 = vst [vmem:[%s271 + $0x30] sm:$0xff] %v2444
      %2453 = vst [vmem:[%s271 + $0x38] sm:$0xff] %v2445
      %p2454 = scmp.lt.s32.totalorder %s17, 1
      %s2455 = scalar_select %p2454, %s17, 1
      %s2456 = smul.addr %s2455, 8
      %s2457 = smul.addr %s2456, 8
      %s2458 = scalar_lea.vmem %s6, %s2457
      // Predicated region
      $region45: #{cross_attention_block.1} parent=43 // pred_check
        %p2459 = pneg %p171
      $region46: #{cross_attention_block.1} parent=43 // pred_check_branch
        %2461 = sbr.rel (%p2459) target = $region48
      $region47: #{cross_attention_block.1} parent=43 // pred_region
        _
      $region48: #{cross_attention_block.1} parent=43 // pred_fallthru
        _
    $region44: #{cross_attention_block.1} parent=5 // pred_fallthru
      _
    %p2462 = scmp.le.s32.totalorder 2, %s12
    // Predicated region
    $region49: #{cross_attention_block.1} parent=5 // pred_check
      %p2463 = pneg %p2462
    $region50: #{cross_attention_block.1} parent=5 // pred_check_branch
      %2465 = sbr.rel (%p2463) target = $region52
    $region51: #{cross_attention_block.1} parent=5 // pred_region
      %s2466 = ssub.s32 %s12, 2
      // Predicated region
      $region53: #{cross_attention_block.1} parent=51 // pred_check
        %p2467 = pneg %p177
      $region54: #{cross_attention_block.1} parent=51 // pred_check_branch
        %2469 = sbr.rel (%p2467) target = $region56
      $region55: #{cross_attention_block.1} parent=51 // pred_region
        %p2470 = scmp.lt.s32.totalorder %s18, 1
        %s2471 = scalar_select %p2470, %s18, 1
        %s2472 = smul.addr %s2471, 8
        %s2473 = smul.addr %s2472, 8
        %s2474 = scalar_lea.vmem %s6, %s2473
      $region56: #{cross_attention_block.1} parent=51 // pred_fallthru
        _
    $region52: #{cross_attention_block.1} parent=5 // pred_fallthru
      _
  $region6: #{cross_attention_block.1} parent=0 // loop_footer
    %s16 = sadd.s32 1, %s12
  $region7: #{cross_attention_block.1} parent=0 // loop_footer_branch
    %11 = sbr.rel target = $region3
  $region8: #{cross_attention_block.1} parent=0 // loop_exit
    _

</llo_original>
